<compile_context>
chip_gen: v7x
topology: tpu7x:2x2x1
jax: 0.10.0
libtpu: 0.0.40
codegen_flags: <defaults>
</compile_context>

<pallas_src>
import functools

import jax
import jax.numpy as jnp
from jax import lax
from jax.experimental import pallas as pl
from jax.experimental.pallas import tpu as pltpu


def _round_up(v, m):
    return (v + m - 1) // m * m


def _pick_nb(N, HW, K):
    """Largest divisor of N that keeps >=2 grid steps (v7x megacore) and a
    modest im2col scratch (<~6 MiB)."""
    best = 1
    for nb in range(1, N + 1):
        if N % nb:
            continue
        if N >= 2 and (N // nb) < 2:
            continue
        if K * nb * HW * 4 > 6 * 1024 * 1024:
            continue
        best = nb
    return best


def convgru_kernel(x_ref, h_ref, w1_ref, w2_ref, mask_ref, out_ref, col_ref,
                   *, H, W, C_pad, HC, Nb):
    """One grid step = Nb images folded into the lane axis (L = Nb*H*W).

    x_ref   : (1, C_pad, L)  padded input (channel C is the all-ones bias lane)
    h_ref   : (1, HC,    L)  hidden state
    w1_ref  : (3*HC, K)      fused [conv_gates ; convc-x-part(+bias)] weights
    w2_ref  : (HC, 9*HC)     convc h-part weights (applied to reset*h taps)
    mask_ref: (9, L) f32     per-tap SAME-padding validity mask
    out_ref : (1, HC, L)
    col_ref : (K, L) VMEM    im2col scratch, K = 9*C_pad + 9*HC (all rows
                             rewritten every step -> no stale-VMEM NaN risk)
    """
    HW = H * W
    L = Nb * HW
    x = x_ref[0]                       # (C_pad, L)
    h = h_ref[0]                       # (HC, L)
    xoff = 9 * C_pad

    # Static per-tap lane shifts; tap t = (dy+1)*3 + (dx+1).
    shifts = [(-(dy * W + dx)) % L for dy in (-1, 0, 1) for dx in (-1, 0, 1)]

    # ---- build im2col slab: 9 x-taps then 9 h-taps (all stores 8-aligned) ---
    for t, s in enumerate(shifts):
        if s == 0:                     # centre tap: no roll, mask is all-ones
            col_ref[t * C_pad:(t + 1) * C_pad, :] = x
            col_ref[xoff + t * HC: xoff + (t + 1) * HC, :] = h
        else:
            m = mask_ref[t:t + 1, :]   # (1, L), 0/1
            col_ref[t * C_pad:(t + 1) * C_pad, :] = (
                pltpu.roll(x, shift=s, axis=1) * m)
            col_ref[xoff + t * HC: xoff + (t + 1) * HC, :] = (
                pltpu.roll(h, shift=s, axis=1) * m)

    # ---- fused matmul: gates (2*HC rows) + convc x-part & bias (HC rows) ----
    m1 = jnp.dot(w1_ref[...], col_ref[...], preferred_element_type=jnp.float32)
    reset = jax.nn.sigmoid(m1[:HC, :])
    update = jax.nn.sigmoid(m1[HC:2 * HC, :])
    convc_x = m1[2 * HC:, :]           # already includes convc bias

    # ---- turn the (already masked) h taps into reset*h taps in place --------
    #   shifted(reset*h, dy, dx) == roll(reset, s) * shifted(h, dy, dx)
    for t, s in enumerate(shifts):
        rows = slice(xoff + t * HC, xoff + (t + 1) * HC)
        r = pltpu.roll(reset, shift=s, axis=1) if s else reset
        col_ref[rows, :] = col_ref[rows, :] * r

    convc = jnp.tanh(convc_x + jnp.dot(w2_ref[...], col_ref[xoff:, :],
                                       preferred_element_type=jnp.float32))
    out_ref[0] = (update * h + (1.0 - update) * convc).astype(out_ref.dtype)


def conv_gru_cell(x_nchw, h_nchw, wg, bg, wc, bc, nb=None):
    """Matches ConvGRUCell.forward. Inputs/outputs are NCHW (PyTorch layout).

    wg: (2*HC, C+HC, 3, 3), bg: (2*HC,), wc: (HC, C+HC, 3, 3), bc: (HC,)
    """
    N, C, H, W = x_nchw.shape
    HC = wc.shape[0]
    HW = H * W
    C_pad = _round_up(C + 1, 8)        # >=1 pad channel; channel C = bias "1"
    K = 9 * C_pad + 9 * HC

    if h_nchw is None:
        h_nchw = jnp.zeros((N, HC, H, W), jnp.float32)

    x = x_nchw.reshape(N, C, HW).astype(jnp.float32)
    h = h_nchw.reshape(N, HC, HW).astype(jnp.float32)

    # Pad x channels: [x | ones(bias lane) | zeros] -> (N, C_pad, HW).
    xp = jnp.concatenate(
        [x, jnp.ones((N, 1, HW), jnp.float32),
         jnp.zeros((N, C_pad - C - 1, HW), jnp.float32)], axis=1)

    if nb is None:
        nb = _pick_nb(N, HW, K)
    G = N // nb
    L = nb * HW

    def fold(a):   # (N, Cc, HW) -> (G, Cc, nb*HW); lane order = [image, pixel]
        Cc = a.shape[1]
        return a.reshape(G, nb, Cc, HW).transpose(0, 2, 1, 3).reshape(G, Cc, L)

    xf = fold(xp)
    hf = fold(h)

    wg = wg.astype(jnp.float32)
    wc = wc.astype(jnp.float32)
    bg = bg.astype(jnp.float32)
    bc = bc.astype(jnp.float32)

    # im2col weight layout; tap index t = ky*3 + kx, column = t*Cch + c.
    def flat_x(w, bias):   # (Cout, C, 3, 3) -> (Cout, 9*C_pad); bias @ tap4/ch C
        cout = w.shape[0]
        wt = jnp.transpose(w, (0, 2, 3, 1)).reshape(cout, 9, C)
        wt = jnp.concatenate(
            [wt, jnp.zeros((cout, 9, C_pad - C), jnp.float32)], axis=2)
        wt = wt.at[:, 4, C].set(bias)
        return wt.reshape(cout, 9 * C_pad)

    def flat_h(w):         # (Cout, HC, 3, 3) -> (Cout, 9*HC)
        cout = w.shape[0]
        return jnp.transpose(w, (0, 2, 3, 1)).reshape(cout, 9 * HC)

    w1 = jnp.concatenate([
        jnp.concatenate([flat_x(wg[:, :C], bg), flat_h(wg[:, C:])], axis=1),
        jnp.concatenate([flat_x(wc[:, :C], bc),
                         jnp.zeros((HC, 9 * HC), jnp.float32)], axis=1),
    ], axis=0)                                        # (3*HC, K)
    w2 = flat_h(wc[:, C:])                            # (HC, 9*HC)

    # Per-tap SAME-padding validity mask, replicated over the nb folded images.
    lane = jnp.arange(L, dtype=jnp.int32)
    p = lane % HW
    row = p // W
    colc = p % W
    masks = []
    for dy in (-1, 0, 1):
        for dx in (-1, 0, 1):
            ok = ((row + dy >= 0) & (row + dy <= H - 1) &
                  (colc + dx >= 0) & (colc + dx <= W - 1))
            masks.append(ok)
    mask = jnp.stack(masks).astype(jnp.float32)       # (9, L)

    kernel = functools.partial(convgru_kernel, H=H, W=W, C_pad=C_pad,
                               HC=HC, Nb=nb)

    cost = pl.CostEstimate(
        flops=2 * N * (3 * HC) * K * HW + 2 * N * HC * (9 * HC) * HW,
        transcendentals=N * 3 * HC * HW,
        bytes_accessed=4 * (N * C_pad * HW + 2 * N * HC * HW
                            + 3 * HC * K + HC * 9 * HC + 9 * L))

    out = pl.pallas_call(
        kernel,
        out_shape=jax.ShapeDtypeStruct((G, HC, L), jnp.float32),
        grid=(G,),
        in_specs=[
            pl.BlockSpec((1, C_pad, L), lambda g: (g, 0, 0)),
            pl.BlockSpec((1, HC, L), lambda g: (g, 0, 0)),
            pl.BlockSpec((3 * HC, K), lambda g: (0, 0)),
            pl.BlockSpec((HC, 9 * HC), lambda g: (0, 0)),
            pl.BlockSpec((9, L), lambda g: (0, 0)),
        ],
        out_specs=pl.BlockSpec((1, HC, L), lambda g: (g, 0, 0)),
        scratch_shapes=[pltpu.VMEM((K, L), jnp.float32)],
        compiler_params=pltpu.CompilerParams(
            dimension_semantics=("parallel",)),
        cost_estimate=cost,
    )(xf, hf, w1, w2, mask)

    out_nchw = (out.reshape(G, HC, nb, HW).transpose(0, 2, 1, 3)
                   .reshape(N, HC, H, W))
    return out_nchw, out_nchw


def conv_gru_cell_ref(x, h, wg, bg, wc, bc):
    """Pure-JAX reference (NCHW), mirrors the PyTorch module exactly."""
    HC = wc.shape[0]
    dn = ('NCHW', 'OIHW', 'NCHW')
    inp = jnp.concatenate([x, h], axis=1)
    gates = lax.conv_general_dilated(inp, wg, (1, 1), 'SAME',
                                     dimension_numbers=dn)
    gates = gates + bg[None, :, None, None]
    reset = jax.nn.sigmoid(gates[:, :HC])
    update = jax.nn.sigmoid(gates[:, HC:])
    inp2 = jnp.concatenate([x, reset * h], axis=1)
    conv = lax.conv_general_dilated(inp2, wc, (1, 1), 'SAME',
                                    dimension_numbers=dn)
    conv = jnp.tanh(conv + bc[None, :, None, None])
    return update * h + (1.0 - update) * conv


if __name__ == "__main__":
    N, C, HC, H, W = 2, 4, 8, 16, 16
    key = jax.random.PRNGKey(0)
    kx, kh, k1, k2, k3, k4 = jax.random.split(key, 6)

    x = jax.random.normal(kx, (N, C, H, W), jnp.float32)
    h = jax.random.normal(kh, (N, HC, H, W), jnp.float32)

    # Deterministic synthetic parameters (PyTorch Conv2d weight/bias shapes).
    wg = 0.1 * jax.random.normal(k1, (2 * HC, C + HC, 3, 3), jnp.float32)
    bg = 0.1 * jax.random.normal(k2, (2 * HC,), jnp.float32)
    wc = 0.1 * jax.random.normal(k3, (HC, C + HC, 3, 3), jnp.float32)
    bc = 0.1 * jax.random.normal(k4, (HC,), jnp.float32)

    out, _ = conv_gru_cell(x, h, wg, bg, wc, bc)
    out = jax.block_until_ready(out)

    ref = conv_gru_cell_ref(x, h, wg, bg, wc, bc)
    assert out.shape == (N, HC, H, W)
    assert jnp.allclose(out, ref, atol=1e-4, rtol=1e-4), \
        f"max err {jnp.max(jnp.abs(out - ref))}"

    print("KERNEL_OK")
</pallas_src>

<mosaic_0001>
module attributes {stable_mosaic.version = 11 : i64} {
  func.func @convgru_kernel(%arg0: i32, %arg1: memref<1x8x256xf32, #tpu.memory_space<vmem>>, %arg2: memref<1x8x256xf32, #tpu.memory_space<vmem>>, %arg3: memref<24x144xf32, #tpu.memory_space<vmem>>, %arg4: memref<8x72xf32, #tpu.memory_space<vmem>>, %arg5: memref<9x256xf32, #tpu.memory_space<vmem>>, %arg6: memref<1x8x256xf32, #tpu.memory_space<vmem>>, %arg7: memref<144x256xf32, #tpu.memory_space<vmem>>) attributes {dimension_semantics = [#tpu.dimension_semantics<parallel>], iteration_bounds = array<i64: 2>, scalar_prefetch = 0 : i64, scratch_operands = 1 : i64, tpu.core_type = #tpu.core_type<tc>, window_params = [{transform_indices = @transform_0, window_bounds = array<i64: 1, 8, 256>}, {transform_indices = @transform_1, window_bounds = array<i64: 1, 8, 256>}, {pipeline_mode = #tpu.pipeline_mode<synchronous>, transform_indices = @transform_2, window_bounds = array<i64: 24, 144>}, {pipeline_mode = #tpu.pipeline_mode<synchronous>, transform_indices = @transform_3, window_bounds = array<i64: 8, 72>}, {pipeline_mode = #tpu.pipeline_mode<synchronous>, transform_indices = @transform_4, window_bounds = array<i64: 9, 256>}, {transform_indices = @transform_5, window_bounds = array<i64: 1, 8, 256>}]} {
    %c0 = arith.constant 0 : index
    %c0_0 = arith.constant 0 : index
    %c0_1 = arith.constant 0 : index
    %0 = vector.load %arg1[%c0, %c0_0, %c0_1] : memref<1x8x256xf32, #tpu.memory_space<vmem>>, vector<1x8x256xf32>
    %1 = vector.shape_cast %0 : vector<1x8x256xf32> to vector<8x256xf32>
    %c0_2 = arith.constant 0 : index
    %c0_3 = arith.constant 0 : index
    %c0_4 = arith.constant 0 : index
    %2 = vector.load %arg2[%c0_2, %c0_3, %c0_4] : memref<1x8x256xf32, #tpu.memory_space<vmem>>, vector<1x8x256xf32>
    %3 = vector.shape_cast %2 : vector<1x8x256xf32> to vector<8x256xf32>
    %c0_5 = arith.constant 0 : index
    %c0_6 = arith.constant 0 : index
    %4 = vector.load %arg5[%c0_5, %c0_6] : memref<9x256xf32, #tpu.memory_space<vmem>>, vector<1x256xf32>
    %c17_i32 = arith.constant 17 : i32
    %5 = tpu.dynamic_rotate %1 by %c17_i32 dim 1 : vector<8x256xf32>, i32 -> vector<8x256xf32>
    %6 = vector.broadcast %4 : vector<1x256xf32> to vector<8x256xf32>
    %7 = arith.mulf %5, %6 : vector<8x256xf32>
    %c0_7 = arith.constant 0 : index
    %c0_8 = arith.constant 0 : index
    %8 = vector.load %arg7[%c0_7, %c0_8] : memref<144x256xf32, #tpu.memory_space<vmem>>, vector<8x256xf32>
    tpu.vector_store %arg7[%c0_7, %c0_8], %7 {strides = array<i32>} : memref<144x256xf32, #tpu.memory_space<vmem>>, vector<8x256xf32>,
    %c17_i32_9 = arith.constant 17 : i32
    %9 = tpu.dynamic_rotate %3 by %c17_i32_9 dim 1 : vector<8x256xf32>, i32 -> vector<8x256xf32>
    %10 = vector.broadcast %4 : vector<1x256xf32> to vector<8x256xf32>
    %11 = arith.mulf %9, %10 : vector<8x256xf32>
    %c72 = arith.constant 72 : index
    %c0_10 = arith.constant 0 : index
    %12 = vector.load %arg7[%c72, %c0_10] : memref<144x256xf32, #tpu.memory_space<vmem>>, vector<8x256xf32>
    tpu.vector_store %arg7[%c72, %c0_10], %11 {strides = array<i32>} : memref<144x256xf32, #tpu.memory_space<vmem>>, vector<8x256xf32>,
    %c1 = arith.constant 1 : index
    %c0_11 = arith.constant 0 : index
    %13 = vector.load %arg5[%c1, %c0_11] : memref<9x256xf32, #tpu.memory_space<vmem>>, vector<1x256xf32>
    %c16_i32 = arith.constant 16 : i32
    %14 = tpu.dynamic_rotate %1 by %c16_i32 dim 1 : vector<8x256xf32>, i32 -> vector<8x256xf32>
    %15 = vector.broadcast %13 : vector<1x256xf32> to vector<8x256xf32>
    %16 = arith.mulf %14, %15 : vector<8x256xf32>
    %c8 = arith.constant 8 : index
    %c0_12 = arith.constant 0 : index
    %17 = vector.load %arg7[%c8, %c0_12] : memref<144x256xf32, #tpu.memory_space<vmem>>, vector<8x256xf32>
    tpu.vector_store %arg7[%c8, %c0_12], %16 {strides = array<i32>} : memref<144x256xf32, #tpu.memory_space<vmem>>, vector<8x256xf32>,
    %c16_i32_13 = arith.constant 16 : i32
    %18 = tpu.dynamic_rotate %3 by %c16_i32_13 dim 1 : vector<8x256xf32>, i32 -> vector<8x256xf32>
    %19 = vector.broadcast %13 : vector<1x256xf32> to vector<8x256xf32>
    %20 = arith.mulf %18, %19 : vector<8x256xf32>
    %c80 = arith.constant 80 : index
    %c0_14 = arith.constant 0 : index
    %21 = vector.load %arg7[%c80, %c0_14] : memref<144x256xf32, #tpu.memory_space<vmem>>, vector<8x256xf32>
    tpu.vector_store %arg7[%c80, %c0_14], %20 {strides = array<i32>} : memref<144x256xf32, #tpu.memory_space<vmem>>, vector<8x256xf32>,
    %c2 = arith.constant 2 : index
    %c0_15 = arith.constant 0 : index
    %22 = vector.load %arg5[%c2, %c0_15] : memref<9x256xf32, #tpu.memory_space<vmem>>, vector<1x256xf32>
    %c15_i32 = arith.constant 15 : i32
    %23 = tpu.dynamic_rotate %1 by %c15_i32 dim 1 : vector<8x256xf32>, i32 -> vector<8x256xf32>
    %24 = vector.broadcast %22 : vector<1x256xf32> to vector<8x256xf32>
    %25 = arith.mulf %23, %24 : vector<8x256xf32>
    %c16 = arith.constant 16 : index
    %c0_16 = arith.constant 0 : index
    %26 = vector.load %arg7[%c16, %c0_16] : memref<144x256xf32, #tpu.memory_space<vmem>>, vector<8x256xf32>
    tpu.vector_store %arg7[%c16, %c0_16], %25 {strides = array<i32>} : memref<144x256xf32, #tpu.memory_space<vmem>>, vector<8x256xf32>,
    %c15_i32_17 = arith.constant 15 : i32
    %27 = tpu.dynamic_rotate %3 by %c15_i32_17 dim 1 : vector<8x256xf32>, i32 -> vector<8x256xf32>
    %28 = vector.broadcast %22 : vector<1x256xf32> to vector<8x256xf32>
    %29 = arith.mulf %27, %28 : vector<8x256xf32>
    %c88 = arith.constant 88 : index
    %c0_18 = arith.constant 0 : index
    %30 = vector.load %arg7[%c88, %c0_18] : memref<144x256xf32, #tpu.memory_space<vmem>>, vector<8x256xf32>
    tpu.vector_store %arg7[%c88, %c0_18], %29 {strides = array<i32>} : memref<144x256xf32, #tpu.memory_space<vmem>>, vector<8x256xf32>,
    %c3 = arith.constant 3 : index
    %c0_19 = arith.constant 0 : index
    %31 = vector.load %arg5[%c3, %c0_19] : memref<9x256xf32, #tpu.memory_space<vmem>>, vector<1x256xf32>
    %c1_i32 = arith.constant 1 : i32
    %32 = tpu.dynamic_rotate %1 by %c1_i32 dim 1 : vector<8x256xf32>, i32 -> vector<8x256xf32>
    %33 = vector.broadcast %31 : vector<1x256xf32> to vector<8x256xf32>
    %34 = arith.mulf %32, %33 : vector<8x256xf32>
    %c24 = arith.constant 24 : index
    %c0_20 = arith.constant 0 : index
    %35 = vector.load %arg7[%c24, %c0_20] : memref<144x256xf32, #tpu.memory_space<vmem>>, vector<8x256xf32>
    tpu.vector_store %arg7[%c24, %c0_20], %34 {strides = array<i32>} : memref<144x256xf32, #tpu.memory_space<vmem>>, vector<8x256xf32>,
    %c1_i32_21 = arith.constant 1 : i32
    %36 = tpu.dynamic_rotate %3 by %c1_i32_21 dim 1 : vector<8x256xf32>, i32 -> vector<8x256xf32>
    %37 = vector.broadcast %31 : vector<1x256xf32> to vector<8x256xf32>
    %38 = arith.mulf %36, %37 : vector<8x256xf32>
    %c96 = arith.constant 96 : index
    %c0_22 = arith.constant 0 : index
    %39 = vector.load %arg7[%c96, %c0_22] : memref<144x256xf32, #tpu.memory_space<vmem>>, vector<8x256xf32>
    tpu.vector_store %arg7[%c96, %c0_22], %38 {strides = array<i32>} : memref<144x256xf32, #tpu.memory_space<vmem>>, vector<8x256xf32>,
    %c32 = arith.constant 32 : index
    %c0_23 = arith.constant 0 : index
    %40 = vector.load %arg7[%c32, %c0_23] : memref<144x256xf32, #tpu.memory_space<vmem>>, vector<8x256xf32>
    tpu.vector_store %arg7[%c32, %c0_23], %1 {strides = array<i32>} : memref<144x256xf32, #tpu.memory_space<vmem>>, vector<8x256xf32>,
    %c104 = arith.constant 104 : index
    %c0_24 = arith.constant 0 : index
    %41 = vector.load %arg7[%c104, %c0_24] : memref<144x256xf32, #tpu.memory_space<vmem>>, vector<8x256xf32>
    tpu.vector_store %arg7[%c104, %c0_24], %3 {strides = array<i32>} : memref<144x256xf32, #tpu.memory_space<vmem>>, vector<8x256xf32>,
    %c5 = arith.constant 5 : index
    %c0_25 = arith.constant 0 : index
    %42 = vector.load %arg5[%c5, %c0_25] : memref<9x256xf32, #tpu.memory_space<vmem>>, vector<1x256xf32>
    %c255_i32 = arith.constant 255 : i32
    %43 = tpu.dynamic_rotate %1 by %c255_i32 dim 1 : vector<8x256xf32>, i32 -> vector<8x256xf32>
    %44 = vector.broadcast %42 : vector<1x256xf32> to vector<8x256xf32>
    %45 = arith.mulf %43, %44 : vector<8x256xf32>
    %c40 = arith.constant 40 : index
    %c0_26 = arith.constant 0 : index
    %46 = vector.load %arg7[%c40, %c0_26] : memref<144x256xf32, #tpu.memory_space<vmem>>, vector<8x256xf32>
    tpu.vector_store %arg7[%c40, %c0_26], %45 {strides = array<i32>} : memref<144x256xf32, #tpu.memory_space<vmem>>, vector<8x256xf32>,
    %c255_i32_27 = arith.constant 255 : i32
    %47 = tpu.dynamic_rotate %3 by %c255_i32_27 dim 1 : vector<8x256xf32>, i32 -> vector<8x256xf32>
    %48 = vector.broadcast %42 : vector<1x256xf32> to vector<8x256xf32>
    %49 = arith.mulf %47, %48 : vector<8x256xf32>
    %c112 = arith.constant 112 : index
    %c0_28 = arith.constant 0 : index
    %50 = vector.load %arg7[%c112, %c0_28] : memref<144x256xf32, #tpu.memory_space<vmem>>, vector<8x256xf32>
    tpu.vector_store %arg7[%c112, %c0_28], %49 {strides = array<i32>} : memref<144x256xf32, #tpu.memory_space<vmem>>, vector<8x256xf32>,
    %c6 = arith.constant 6 : index
    %c0_29 = arith.constant 0 : index
    %51 = vector.load %arg5[%c6, %c0_29] : memref<9x256xf32, #tpu.memory_space<vmem>>, vector<1x256xf32>
    %c241_i32 = arith.constant 241 : i32
    %52 = tpu.dynamic_rotate %1 by %c241_i32 dim 1 : vector<8x256xf32>, i32 -> vector<8x256xf32>
    %53 = vector.broadcast %51 : vector<1x256xf32> to vector<8x256xf32>
    %54 = arith.mulf %52, %53 : vector<8x256xf32>
    %c48 = arith.constant 48 : index
    %c0_30 = arith.constant 0 : index
    %55 = vector.load %arg7[%c48, %c0_30] : memref<144x256xf32, #tpu.memory_space<vmem>>, vector<8x256xf32>
    tpu.vector_store %arg7[%c48, %c0_30], %54 {strides = array<i32>} : memref<144x256xf32, #tpu.memory_space<vmem>>, vector<8x256xf32>,
    %c241_i32_31 = arith.constant 241 : i32
    %56 = tpu.dynamic_rotate %3 by %c241_i32_31 dim 1 : vector<8x256xf32>, i32 -> vector<8x256xf32>
    %57 = vector.broadcast %51 : vector<1x256xf32> to vector<8x256xf32>
    %58 = arith.mulf %56, %57 : vector<8x256xf32>
    %c120 = arith.constant 120 : index
    %c0_32 = arith.constant 0 : index
    %59 = vector.load %arg7[%c120, %c0_32] : memref<144x256xf32, #tpu.memory_space<vmem>>, vector<8x256xf32>
    tpu.vector_store %arg7[%c120, %c0_32], %58 {strides = array<i32>} : memref<144x256xf32, #tpu.memory_space<vmem>>, vector<8x256xf32>,
    %c7 = arith.constant 7 : index
    %c0_33 = arith.constant 0 : index
    %60 = vector.load %arg5[%c7, %c0_33] : memref<9x256xf32, #tpu.memory_space<vmem>>, vector<1x256xf32>
    %c240_i32 = arith.constant 240 : i32
    %61 = tpu.dynamic_rotate %1 by %c240_i32 dim 1 : vector<8x256xf32>, i32 -> vector<8x256xf32>
    %62 = vector.broadcast %60 : vector<1x256xf32> to vector<8x256xf32>
    %63 = arith.mulf %61, %62 : vector<8x256xf32>
    %c56 = arith.constant 56 : index
    %c0_34 = arith.constant 0 : index
    %64 = vector.load %arg7[%c56, %c0_34] : memref<144x256xf32, #tpu.memory_space<vmem>>, vector<8x256xf32>
    tpu.vector_store %arg7[%c56, %c0_34], %63 {strides = array<i32>} : memref<144x256xf32, #tpu.memory_space<vmem>>, vector<8x256xf32>,
    %c240_i32_35 = arith.constant 240 : i32
    %65 = tpu.dynamic_rotate %3 by %c240_i32_35 dim 1 : vector<8x256xf32>, i32 -> vector<8x256xf32>
    %66 = vector.broadcast %60 : vector<1x256xf32> to vector<8x256xf32>
    %67 = arith.mulf %65, %66 : vector<8x256xf32>
    %c128 = arith.constant 128 : index
    %c0_36 = arith.constant 0 : index
    %68 = vector.load %arg7[%c128, %c0_36] : memref<144x256xf32, #tpu.memory_space<vmem>>, vector<8x256xf32>
    tpu.vector_store %arg7[%c128, %c0_36], %67 {strides = array<i32>} : memref<144x256xf32, #tpu.memory_space<vmem>>, vector<8x256xf32>,
    %c8_37 = arith.constant 8 : index
    %c0_38 = arith.constant 0 : index
    %69 = vector.load %arg5[%c8_37, %c0_38] : memref<9x256xf32, #tpu.memory_space<vmem>>, vector<1x256xf32>
    %c239_i32 = arith.constant 239 : i32
    %70 = tpu.dynamic_rotate %1 by %c239_i32 dim 1 : vector<8x256xf32>, i32 -> vector<8x256xf32>
    %71 = vector.broadcast %69 : vector<1x256xf32> to vector<8x256xf32>
    %72 = arith.mulf %70, %71 : vector<8x256xf32>
    %c64 = arith.constant 64 : index
    %c0_39 = arith.constant 0 : index
    %73 = vector.load %arg7[%c64, %c0_39] : memref<144x256xf32, #tpu.memory_space<vmem>>, vector<8x256xf32>
    tpu.vector_store %arg7[%c64, %c0_39], %72 {strides = array<i32>} : memref<144x256xf32, #tpu.memory_space<vmem>>, vector<8x256xf32>,
    %c239_i32_40 = arith.constant 239 : i32
    %74 = tpu.dynamic_rotate %3 by %c239_i32_40 dim 1 : vector<8x256xf32>, i32 -> vector<8x256xf32>
    %75 = vector.broadcast %69 : vector<1x256xf32> to vector<8x256xf32>
    %76 = arith.mulf %74, %75 : vector<8x256xf32>
    %c136 = arith.constant 136 : index
    %c0_41 = arith.constant 0 : index
    %77 = vector.load %arg7[%c136, %c0_41] : memref<144x256xf32, #tpu.memory_space<vmem>>, vector<8x256xf32>
    tpu.vector_store %arg7[%c136, %c0_41], %76 {strides = array<i32>} : memref<144x256xf32, #tpu.memory_space<vmem>>, vector<8x256xf32>,
    %c0_42 = arith.constant 0 : index
    %c0_43 = arith.constant 0 : index
    %78 = vector.load %arg3[%c0_42, %c0_43] : memref<24x144xf32, #tpu.memory_space<vmem>>, vector<24x144xf32>
    %c0_44 = arith.constant 0 : index
    %c0_45 = arith.constant 0 : index
    %79 = vector.load %arg7[%c0_44, %c0_45] : memref<144x256xf32, #tpu.memory_space<vmem>>, vector<144x256xf32>
    %cst = arith.constant dense<0.000000e+00> : vector<24x256xf32>
    %80 = tpu.matmul %78, %79, %cst {dimension_numbers = #tpu.dot_dimension_numbers<[1], [0], [0], [1], [0, 0, 1, 1], [], []>} : vector<24x144xf32>, vector<144x256xf32>, vector<24x256xf32> -> vector<24x256xf32>
    %81 = vector.extract_strided_slice %80 {offsets = [0, 0], sizes = [8, 256], strides = [1, 1]} : vector<24x256xf32> to vector<8x256xf32>
    %82 = arith.negf %81 : vector<8x256xf32>
    %83 = math.exp %82 : vector<8x256xf32>
    %cst_46 = arith.constant 1.000000e+00 : f32
    %84 = vector.broadcast %cst_46 : f32 to vector<8x256xf32>
    %85 = arith.addf %84, %83 : vector<8x256xf32>
    %86 = arith.divf %84, %85 : vector<8x256xf32>
    %87 = vector.extract_strided_slice %80 {offsets = [8, 0], sizes = [8, 256], strides = [1, 1]} : vector<24x256xf32> to vector<8x256xf32>
    %88 = arith.negf %87 : vector<8x256xf32>
    %89 = math.exp %88 : vector<8x256xf32>
    %cst_47 = arith.constant 1.000000e+00 : f32
    %90 = vector.broadcast %cst_47 : f32 to vector<8x256xf32>
    %91 = arith.addf %90, %89 : vector<8x256xf32>
    %92 = arith.divf %90, %91 : vector<8x256xf32>
    %93 = vector.extract_strided_slice %80 {offsets = [16, 0], sizes = [8, 256], strides = [1, 1]} : vector<24x256xf32> to vector<8x256xf32>
    %c17_i32_48 = arith.constant 17 : i32
    %94 = tpu.dynamic_rotate %86 by %c17_i32_48 dim 1 : vector<8x256xf32>, i32 -> vector<8x256xf32>
    %c72_49 = arith.constant 72 : index
    %c0_50 = arith.constant 0 : index
    %95 = vector.load %arg7[%c72_49, %c0_50] : memref<144x256xf32, #tpu.memory_space<vmem>>, vector<8x256xf32>
    %96 = arith.mulf %95, %94 : vector<8x256xf32>
    %c72_51 = arith.constant 72 : index
    %c0_52 = arith.constant 0 : index
    %97 = vector.load %arg7[%c72_51, %c0_52] : memref<144x256xf32, #tpu.memory_space<vmem>>, vector<8x256xf32>
    tpu.vector_store %arg7[%c72_51, %c0_52], %96 {strides = array<i32>} : memref<144x256xf32, #tpu.memory_space<vmem>>, vector<8x256xf32>,
    %c16_i32_53 = arith.constant 16 : i32
    %98 = tpu.dynamic_rotate %86 by %c16_i32_53 dim 1 : vector<8x256xf32>, i32 -> vector<8x256xf32>
    %c80_54 = arith.constant 80 : index
    %c0_55 = arith.constant 0 : index
    %99 = vector.load %arg7[%c80_54, %c0_55] : memref<144x256xf32, #tpu.memory_space<vmem>>, vector<8x256xf32>
    %100 = arith.mulf %99, %98 : vector<8x256xf32>
    %c80_56 = arith.constant 80 : index
    %c0_57 = arith.constant 0 : index
    %101 = vector.load %arg7[%c80_56, %c0_57] : memref<144x256xf32, #tpu.memory_space<vmem>>, vector<8x256xf32>
    tpu.vector_store %arg7[%c80_56, %c0_57], %100 {strides = array<i32>} : memref<144x256xf32, #tpu.memory_space<vmem>>, vector<8x256xf32>,
    %c15_i32_58 = arith.constant 15 : i32
    %102 = tpu.dynamic_rotate %86 by %c15_i32_58 dim 1 : vector<8x256xf32>, i32 -> vector<8x256xf32>
    %c88_59 = arith.constant 88 : index
    %c0_60 = arith.constant 0 : index
    %103 = vector.load %arg7[%c88_59, %c0_60] : memref<144x256xf32, #tpu.memory_space<vmem>>, vector<8x256xf32>
    %104 = arith.mulf %103, %102 : vector<8x256xf32>
    %c88_61 = arith.constant 88 : index
    %c0_62 = arith.constant 0 : index
    %105 = vector.load %arg7[%c88_61, %c0_62] : memref<144x256xf32, #tpu.memory_space<vmem>>, vector<8x256xf32>
    tpu.vector_store %arg7[%c88_61, %c0_62], %104 {strides = array<i32>} : memref<144x256xf32, #tpu.memory_space<vmem>>, vector<8x256xf32>,
    %c1_i32_63 = arith.constant 1 : i32
    %106 = tpu.dynamic_rotate %86 by %c1_i32_63 dim 1 : vector<8x256xf32>, i32 -> vector<8x256xf32>
    %c96_64 = arith.constant 96 : index
    %c0_65 = arith.constant 0 : index
    %107 = vector.load %arg7[%c96_64, %c0_65] : memref<144x256xf32, #tpu.memory_space<vmem>>, vector<8x256xf32>
    %108 = arith.mulf %107, %106 : vector<8x256xf32>
    %c96_66 = arith.constant 96 : index
    %c0_67 = arith.constant 0 : index
    %109 = vector.load %arg7[%c96_66, %c0_67] : memref<144x256xf32, #tpu.memory_space<vmem>>, vector<8x256xf32>
    tpu.vector_store %arg7[%c96_66, %c0_67], %108 {strides = array<i32>} : memref<144x256xf32, #tpu.memory_space<vmem>>, vector<8x256xf32>,
    %c104_68 = arith.constant 104 : index
    %c0_69 = arith.constant 0 : index
    %110 = vector.load %arg7[%c104_68, %c0_69] : memref<144x256xf32, #tpu.memory_space<vmem>>, vector<8x256xf32>
    %111 = arith.mulf %110, %86 : vector<8x256xf32>
    %c104_70 = arith.constant 104 : index
    %c0_71 = arith.constant 0 : index
    %112 = vector.load %arg7[%c104_70, %c0_71] : memref<144x256xf32, #tpu.memory_space<vmem>>, vector<8x256xf32>
    tpu.vector_store %arg7[%c104_70, %c0_71], %111 {strides = array<i32>} : memref<144x256xf32, #tpu.memory_space<vmem>>, vector<8x256xf32>,
    %c255_i32_72 = arith.constant 255 : i32
    %113 = tpu.dynamic_rotate %86 by %c255_i32_72 dim 1 : vector<8x256xf32>, i32 -> vector<8x256xf32>
    %c112_73 = arith.constant 112 : index
    %c0_74 = arith.constant 0 : index
    %114 = vector.load %arg7[%c112_73, %c0_74] : memref<144x256xf32, #tpu.memory_space<vmem>>, vector<8x256xf32>
    %115 = arith.mulf %114, %113 : vector<8x256xf32>
    %c112_75 = arith.constant 112 : index
    %c0_76 = arith.constant 0 : index
    %116 = vector.load %arg7[%c112_75, %c0_76] : memref<144x256xf32, #tpu.memory_space<vmem>>, vector<8x256xf32>
    tpu.vector_store %arg7[%c112_75, %c0_76], %115 {strides = array<i32>} : memref<144x256xf32, #tpu.memory_space<vmem>>, vector<8x256xf32>,
    %c241_i32_77 = arith.constant 241 : i32
    %117 = tpu.dynamic_rotate %86 by %c241_i32_77 dim 1 : vector<8x256xf32>, i32 -> vector<8x256xf32>
    %c120_78 = arith.constant 120 : index
    %c0_79 = arith.constant 0 : index
    %118 = vector.load %arg7[%c120_78, %c0_79] : memref<144x256xf32, #tpu.memory_space<vmem>>, vector<8x256xf32>
    %119 = arith.mulf %118, %117 : vector<8x256xf32>
    %c120_80 = arith.constant 120 : index
    %c0_81 = arith.constant 0 : index
    %120 = vector.load %arg7[%c120_80, %c0_81] : memref<144x256xf32, #tpu.memory_space<vmem>>, vector<8x256xf32>
    tpu.vector_store %arg7[%c120_80, %c0_81], %119 {strides = array<i32>} : memref<144x256xf32, #tpu.memory_space<vmem>>, vector<8x256xf32>,
    %c240_i32_82 = arith.constant 240 : i32
    %121 = tpu.dynamic_rotate %86 by %c240_i32_82 dim 1 : vector<8x256xf32>, i32 -> vector<8x256xf32>
    %c128_83 = arith.constant 128 : index
    %c0_84 = arith.constant 0 : index
    %122 = vector.load %arg7[%c128_83, %c0_84] : memref<144x256xf32, #tpu.memory_space<vmem>>, vector<8x256xf32>
    %123 = arith.mulf %122, %121 : vector<8x256xf32>
    %c128_85 = arith.constant 128 : index
    %c0_86 = arith.constant 0 : index
    %124 = vector.load %arg7[%c128_85, %c0_86] : memref<144x256xf32, #tpu.memory_space<vmem>>, vector<8x256xf32>
    tpu.vector_store %arg7[%c128_85, %c0_86], %123 {strides = array<i32>} : memref<144x256xf32, #tpu.memory_space<vmem>>, vector<8x256xf32>,
    %c239_i32_87 = arith.constant 239 : i32
    %125 = tpu.dynamic_rotate %86 by %c239_i32_87 dim 1 : vector<8x256xf32>, i32 -> vector<8x256xf32>
    %c136_88 = arith.constant 136 : index
    %c0_89 = arith.constant 0 : index
    %126 = vector.load %arg7[%c136_88, %c0_89] : memref<144x256xf32, #tpu.memory_space<vmem>>, vector<8x256xf32>
    %127 = arith.mulf %126, %125 : vector<8x256xf32>
    %c136_90 = arith.constant 136 : index
    %c0_91 = arith.constant 0 : index
    %128 = vector.load %arg7[%c136_90, %c0_91] : memref<144x256xf32, #tpu.memory_space<vmem>>, vector<8x256xf32>
    tpu.vector_store %arg7[%c136_90, %c0_91], %127 {strides = array<i32>} : memref<144x256xf32, #tpu.memory_space<vmem>>, vector<8x256xf32>,
    %c0_92 = arith.constant 0 : index
    %c0_93 = arith.constant 0 : index
    %129 = vector.load %arg4[%c0_92, %c0_93] : memref<8x72xf32, #tpu.memory_space<vmem>>, vector<8x72xf32>
    %c72_94 = arith.constant 72 : index
    %c0_95 = arith.constant 0 : index
    %130 = vector.load %arg7[%c72_94, %c0_95] : memref<144x256xf32, #tpu.memory_space<vmem>>, vector<72x256xf32>
    %cst_96 = arith.constant dense<0.000000e+00> : vector<8x256xf32>
    %131 = tpu.matmul %129, %130, %cst_96 {dimension_numbers = #tpu.dot_dimension_numbers<[1], [0], [0], [1], [0, 0, 1, 1], [], []>} : vector<8x72xf32>, vector<72x256xf32>, vector<8x256xf32> -> vector<8x256xf32>
    %132 = arith.addf %93, %131 : vector<8x256xf32>
    %133 = math.tanh %132 : vector<8x256xf32>
    %134 = arith.mulf %92, %3 : vector<8x256xf32>
    %cst_97 = arith.constant 1.000000e+00 : f32
    %135 = vector.broadcast %cst_97 : f32 to vector<8x256xf32>
    %136 = arith.subf %135, %92 : vector<8x256xf32>
    %137 = arith.mulf %136, %133 : vector<8x256xf32>
    %138 = arith.addf %134, %137 : vector<8x256xf32>
    %c0_98 = arith.constant 0 : index
    %c0_99 = arith.constant 0 : index
    %c0_100 = arith.constant 0 : index
    %139 = vector.load %arg6[%c0_98, %c0_99, %c0_100] : memref<1x8x256xf32, #tpu.memory_space<vmem>>, vector<1x8x256xf32>
    %140 = vector.shape_cast %139 : vector<1x8x256xf32> to vector<8x256xf32>
    %141 = vector.shape_cast %138 : vector<8x256xf32> to vector<1x8x256xf32>
    tpu.vector_store %arg6[%c0_98, %c0_99, %c0_100], %141 {strides = array<i32>} : memref<1x8x256xf32, #tpu.memory_space<vmem>>, vector<1x8x256xf32>,
    return
  }
  func.func @transform_0(%arg0: i32) -> (i32, i32, i32) {
    %c0_i32 = arith.constant 0 : i32
    %c0_i32_0 = arith.constant 0 : i32
    %c0_i32_1 = arith.constant 0 : i32
    return %arg0, %c0_i32, %c0_i32_0 : i32, i32, i32
  }
  func.func @transform_1(%arg0: i32) -> (i32, i32, i32) {
    %c0_i32 = arith.constant 0 : i32
    %c0_i32_0 = arith.constant 0 : i32
    %c0_i32_1 = arith.constant 0 : i32
    return %arg0, %c0_i32, %c0_i32_0 : i32, i32, i32
  }
  func.func @transform_2(%arg0: i32) -> (i32, i32) {
    %c0_i32 = arith.constant 0 : i32
    %c0_i32_0 = arith.constant 0 : i32
    %c0_i32_1 = arith.constant 0 : i32
    return %c0_i32, %c0_i32_0 : i32, i32
  }
  func.func @transform_3(%arg0: i32) -> (i32, i32) {
    %c0_i32 = arith.constant 0 : i32
    %c0_i32_0 = arith.constant 0 : i32
    %c0_i32_1 = arith.constant 0 : i32
    return %c0_i32, %c0_i32_0 : i32, i32
  }
  func.func @transform_4(%arg0: i32) -> (i32, i32) {
    %c0_i32 = arith.constant 0 : i32
    %c0_i32_0 = arith.constant 0 : i32
    %c0_i32_1 = arith.constant 0 : i32
    return %c0_i32, %c0_i32_0 : i32, i32
  }
  func.func @transform_5(%arg0: i32) -> (i32, i32, i32) {
    %c0_i32 = arith.constant 0 : i32
    %c0_i32_0 = arith.constant 0 : i32
    %c0_i32_1 = arith.constant 0 : i32
    return %arg0, %c0_i32, %c0_i32_0 : i32, i32, i32
  }
}

</mosaic_0001>

<llo_original>
// kernel: tpu_custom_call.1
$region0: #{tpu_custom_call.1}
  #allocation0 [shape = 'u32[]', space=smem, size = 0x4, offset = 0x4, fixed_abs, tag = 'smem constant byte address 0x4 - core index']
  #allocation1 [shape = 'u32[144,128]{1,0:T(1,128)}', space=vmem, size = 0x12000, scoped, tag = 'internal scratch']
  #allocation2 [shape = 'f32[144,256]{1,0:T(8,128)}', space=vmem, size = 0x24000, scoped, tag = 'scratch operand']
  %s0 = inlined_call_operand.hbm [shape: f32[2,8,256], index: 0, kind: input, shape index: {}]
  %s1 = inlined_call_operand.hbm [shape: f32[2,8,256], index: 1, kind: input, shape index: {}]
  %s2 = inlined_call_operand.hbm [shape: f32[24,144], index: 2, kind: input, shape index: {}]
  %s3 = inlined_call_operand.vmem [shape: f32[8,72], index: 3, kind: input, shape index: {}]
  %s4 = inlined_call_operand.hbm [shape: f32[9,256], index: 4, kind: input, shape index: {}]
  %s5 = inlined_call_operand.hbm [shape: f32[2,8,256], index: 5, kind: output, shape index: {}]
  %s6 = sld [smem:[#allocation0]]
  $region69: #{tpu_custom_call.1} parent=0
    _
  %s8 = ssub.s32 1, %s6
  %s9 = scalar_select 0, %s8, %s6
  $region1: #{tpu_custom_call.1} parent=0
    #allocation3 [shape = 'u8[16384]{0}', space=vmem, size = 0x4000, scoped, tag = 'input window, operand 0']
    #allocation4 [shape = 's32[2]{0}', space=sflag, size = 0x8, scoped, tag = 'scoped memory for tpu_custom_call.1']
    #allocation5 [shape = 's32[2]{0}', space=sflag, size = 0x8, scoped, tag = 'scoped memory for tpu_custom_call.1']
    #allocation6 [shape = 'u8[16384]{0}', space=vmem, size = 0x4000, scoped, tag = 'input window, operand 1']
    #allocation7 [shape = 's32[2]{0}', space=sflag, size = 0x8, scoped, tag = 'scoped memory for tpu_custom_call.1']
    #allocation8 [shape = 'u8[24576]{0}', space=vmem, size = 0x6000, scoped, tag = 'input window, operand 2, single buffered']
    #allocation9 [shape = 'u8[16384]{0}', space=vmem, size = 0x4000, scoped, tag = 'input window, operand 4, single buffered']
    #allocation10 [shape = 's32[1]{0}', space=sflag, size = 0x4, scoped, tag = 'scoped memory for tpu_custom_call.1']
    #allocation11 [shape = 'u8[16384]{0}', space=vmem, size = 0x4000, scoped, tag = 'output window, operand 0']
    %10 = vsyncpa [#allocation4], 0
    %s11 = scalar_lea.sflag [#allocation4], 1
    %12 = vsyncpa %s11, 0
    %13 = vsyncpa [#allocation7], 0
    %s14 = scalar_lea.sflag [#allocation7], 1
    %15 = vsyncpa %s14, 0
    %16 = vsyncpa [#allocation10], 0
    %17 = vsyncpa [#allocation5], 0
    %s18 = scalar_lea.sflag [#allocation5], 1
    %19 = vsyncpa %s18, 0
    loop: start=0, step=1, limit=4
    $region2: #{tpu_custom_call.1} parent=1 // loop_pre_header
      _
    $region3: #{tpu_custom_call.1} parent=1 // loop_header
      %s21 = sphi 0, %s25
      %p22 = scmp.ge.s32.totalorder %s21, 4
      %s31 = sphi 0, %s33
      %s34 = sphi 0, %s31
      %s35 = sphi 0, %s34
      %s51 = sphi 0, %s35
      %s57 = sphi 0, %s59
      %s60 = sphi 0, %s57
      %s61 = sphi 0, %s60
      %s77 = sphi 0, %s61
      %s81 = sphi 0, %s81
      %s83 = sphi 0, %s81
      %s84 = sphi 0, %s83
      %s98 = sphi 0, %s84
      %s102 = sphi 0, %s102
      %s104 = sphi 0, %s102
      %s105 = sphi 0, %s104
      %s119 = sphi 0, %s105
      %s123 = sphi 0, %s123
      %s125 = sphi 0, %s123
      %s126 = sphi 0, %s125
      %s140 = sphi 0, %s126
      %s146 = sphi 0, %s148
      %s149 = sphi 0, %s146
      %s150 = sphi 0, %s149
      %s166 = sphi 0, %s150
    $region4: #{tpu_custom_call.1} parent=1 // loop_header_branch
      %24 = sbr.rel (%p22) target = $region8
    $region5: #{tpu_custom_call.1} parent=1 // loop_body
      %s26 = ssub.s32 %s21, 1
      %s27 = ssub.s32 %s21, 2
      %s28 = sadd.s32 %s21, 1
      %s29 = ssub.s32 %s21, %s28
      %p30 = scmp.eq.s32.totalorder %s29, 0
      %s32 = sadd.s32 %s31, 1
      %s33 = scalar_select %p30, %s31, %s32
      %p36 = pneg %p30
      %p37 = scmp.eq.s32.totalorder %s21, 1
      %p38 = por %p36, %p37
      %p39 = scmp.ne.s32.totalorder %s31, %s34
      %p40 = scmp.eq.s32.totalorder %s21, 0
      %p41 = por %p39, %p40
      %p42 = scmp.ne.s32.totalorder %s31, %s34
      %p43 = scmp.eq.s32.totalorder %s26, 1
      %p44 = por %p42, %p43
      %p45 = scmp.ne.s32.totalorder %s34, %s35
      %p46 = scmp.eq.s32.totalorder %s26, 0
      %p47 = por %p45, %p46
      %p48 = scmp.ne.s32.totalorder %s34, %s35
      %p49 = scmp.eq.s32.totalorder %s27, 1
      %p50 = por %p48, %p49
      %p52 = scmp.ne.s32.totalorder %s35, %s51
      %p53 = scmp.eq.s32.totalorder %s27, 0
      %p54 = por %p52, %p53
      %s55 = ssub.s32 %s21, %s28
      %p56 = scmp.eq.s32.totalorder %s55, 0
      %s58 = sadd.s32 %s57, 1
      %s59 = scalar_select %p56, %s57, %s58
      %p62 = pneg %p56
      %p63 = scmp.eq.s32.totalorder %s21, 1
      %p64 = por %p62, %p63
      %p65 = scmp.ne.s32.totalorder %s57, %s60
      %p66 = scmp.eq.s32.totalorder %s21, 0
      %p67 = por %p65, %p66
      %p68 = scmp.ne.s32.totalorder %s57, %s60
      %p69 = scmp.eq.s32.totalorder %s26, 1
      %p70 = por %p68, %p69
      %p71 = scmp.ne.s32.totalorder %s60, %s61
      %p72 = scmp.eq.s32.totalorder %s26, 0
      %p73 = por %p71, %p72
      %p74 = scmp.ne.s32.totalorder %s60, %s61
      %p75 = scmp.eq.s32.totalorder %s27, 1
      %p76 = por %p74, %p75
      %p78 = scmp.ne.s32.totalorder %s61, %s77
      %p79 = scmp.eq.s32.totalorder %s27, 0
      %p80 = por %p78, %p79
      %s82 = sadd.s32 %s81, 1
      %p85 = scmp.eq.s32.totalorder %s21, 1
      %p86 = scmp.ne.s32.totalorder %s81, %s83
      %p87 = scmp.eq.s32.totalorder %s21, 0
      %p88 = por %p86, %p87
      %p89 = scmp.ne.s32.totalorder %s81, %s83
      %p90 = scmp.eq.s32.totalorder %s26, 1
      %p91 = por %p89, %p90
      %p92 = scmp.ne.s32.totalorder %s83, %s84
      %p93 = scmp.eq.s32.totalorder %s26, 0
      %p94 = por %p92, %p93
      %p95 = scmp.ne.s32.totalorder %s83, %s84
      %p96 = scmp.eq.s32.totalorder %s27, 1
      %p97 = por %p95, %p96
      %p99 = scmp.ne.s32.totalorder %s84, %s98
      %p100 = scmp.eq.s32.totalorder %s27, 0
      %p101 = por %p99, %p100
      %s103 = sadd.s32 %s102, 1
      %p106 = scmp.eq.s32.totalorder %s21, 1
      %p107 = scmp.ne.s32.totalorder %s102, %s104
      %p108 = scmp.eq.s32.totalorder %s21, 0
      %p109 = por %p107, %p108
      %p110 = scmp.ne.s32.totalorder %s102, %s104
      %p111 = scmp.eq.s32.totalorder %s26, 1
      %p112 = por %p110, %p111
      %p113 = scmp.ne.s32.totalorder %s104, %s105
      %p114 = scmp.eq.s32.totalorder %s26, 0
      %p115 = por %p113, %p114
      %p116 = scmp.ne.s32.totalorder %s104, %s105
      %p117 = scmp.eq.s32.totalorder %s27, 1
      %p118 = por %p116, %p117
      %p120 = scmp.ne.s32.totalorder %s105, %s119
      %p121 = scmp.eq.s32.totalorder %s27, 0
      %p122 = por %p120, %p121
      %s124 = sadd.s32 %s123, 1
      %p127 = scmp.eq.s32.totalorder %s21, 1
      %p128 = scmp.ne.s32.totalorder %s123, %s125
      %p129 = scmp.eq.s32.totalorder %s21, 0
      %p130 = por %p128, %p129
      %p131 = scmp.ne.s32.totalorder %s123, %s125
      %p132 = scmp.eq.s32.totalorder %s26, 1
      %p133 = por %p131, %p132
      %p134 = scmp.ne.s32.totalorder %s125, %s126
      %p135 = scmp.eq.s32.totalorder %s26, 0
      %p136 = por %p134, %p135
      %p137 = scmp.ne.s32.totalorder %s125, %s126
      %p138 = scmp.eq.s32.totalorder %s27, 1
      %p139 = por %p137, %p138
      %p141 = scmp.ne.s32.totalorder %s126, %s140
      %p142 = scmp.eq.s32.totalorder %s27, 0
      %p143 = por %p141, %p142
      %s144 = ssub.s32 %s21, %s28
      %p145 = scmp.eq.s32.totalorder %s144, 0
      %s147 = sadd.s32 %s146, 1
      %s148 = scalar_select %p145, %s146, %s147
      %p151 = pneg %p145
      %p152 = scmp.eq.s32.totalorder %s21, 1
      %p153 = por %p151, %p152
      %p154 = scmp.ne.s32.totalorder %s146, %s149
      %p155 = scmp.eq.s32.totalorder %s21, 0
      %p156 = por %p154, %p155
      %p157 = scmp.ne.s32.totalorder %s146, %s149
      %p158 = scmp.eq.s32.totalorder %s26, 1
      %p159 = por %p157, %p158
      %p160 = scmp.ne.s32.totalorder %s149, %s150
      %p161 = scmp.eq.s32.totalorder %s26, 0
      %p162 = por %p160, %p161
      %p163 = scmp.ne.s32.totalorder %s149, %s150
      %p164 = scmp.eq.s32.totalorder %s27, 1
      %p165 = por %p163, %p164
      %p167 = scmp.ne.s32.totalorder %s150, %s166
      %p168 = scmp.eq.s32.totalorder %s27, 0
      %p169 = por %p167, %p168
      %p170 = scmp.le.s32.totalorder 1, %s21
      %p171 = scmp.lt.s32.totalorder %s21, 3
      %p172 = pnand %p170, %p171
      %p173 = pneg %p172
      // Predicated region
      $region9: #{tpu_custom_call.1} parent=5 // pred_check
        _
      $region10: #{tpu_custom_call.1} parent=5 // pred_check_branch
        %175 = sbr.rel (%p172) target = $region12
      $region11: #{tpu_custom_call.1} parent=5 // pred_region
        %s176 = ssub.s32 %s21, 1
        // Predicated region
        $region13: #{tpu_custom_call.1} parent=11 // pred_check
          %p177 = pneg %p94
        $region14: #{tpu_custom_call.1} parent=11 // pred_check_branch
          %179 = sbr.rel (%p177) target = $region16
        $region15: #{tpu_custom_call.1} parent=11 // pred_region
          %s181 = ssub.s32 768, 768
          %182 = vsyncadd [#allocation7], %s181
          %s183 = sshll.u32 [#allocation8], 4
          %s184 = int_to_ptr.vmem [resolvable:$true] %s183
          %189 = dma.hbm_to_vmem [thread:$0]  %s2, 768, %s184, [#allocation7], 256, 256, 16
        $region16: #{tpu_custom_call.1} parent=11 // pred_fallthru
          _
        // Predicated region
        $region17: #{tpu_custom_call.1} parent=11 // pred_check
          %p190 = pneg %p115
        $region18: #{tpu_custom_call.1} parent=11 // pred_check_branch
          %192 = sbr.rel (%p190) target = $region20
        $region19: #{tpu_custom_call.1} parent=11 // pred_region
          _
        $region20: #{tpu_custom_call.1} parent=11 // pred_fallthru
          _
        // Predicated region
        $region21: #{tpu_custom_call.1} parent=11 // pred_check
          %p193 = pneg %p136
        $region22: #{tpu_custom_call.1} parent=11 // pred_check_branch
          %195 = sbr.rel (%p193) target = $region24
        $region23: #{tpu_custom_call.1} parent=11 // pred_region
          %s197 = ssub.s32 512, 512
          %198 = vsyncadd [#allocation10], %s197
          %s199 = sshll.u32 [#allocation9], 4
          %s200 = int_to_ptr.vmem [resolvable:$true] %s199
          %205 = dma.hbm_to_vmem [thread:$0]  %s4, 512, %s200, [#allocation10], 256, 256, 16
        $region24: #{tpu_custom_call.1} parent=11 // pred_fallthru
          _
      $region12: #{tpu_custom_call.1} parent=5 // pred_fallthru
        _
      %p206 = scmp.lt.s32.totalorder %s21, 2
      // Predicated region
      $region25: #{tpu_custom_call.1} parent=5 // pred_check
        %p207 = pneg %p206
      $region26: #{tpu_custom_call.1} parent=5 // pred_check_branch
        %209 = sbr.rel (%p207) target = $region28
      $region27: #{tpu_custom_call.1} parent=5 // pred_region
        // Predicated region
        $region29: #{tpu_custom_call.1} parent=27 // pred_check
          %p210 = pneg %p41
        $region30: #{tpu_custom_call.1} parent=27 // pred_check_branch
          %212 = sbr.rel (%p210) target = $region32
        $region31: #{tpu_custom_call.1} parent=27 // pred_region
          %s213 = sand.u32 %s31, 1
          %s214 = scalar_lea.sflag [#allocation4], %s213
          %s215 = sand.u32 %s31, 1
          %s216 = smul.addr %s215, 16
          %s217 = scalar_lea.vmem [#allocation3], %s216
          %s219 = ssub.s32 256, 256
          %220 = vsyncadd %s214, %s219
          %s221 = smul.addr %s21, 2
          %s222 = smul.addr %s221, 128
          %s223 = scalar_lea.hbm %s0, %s222
          %s225 = sshll.u32 %s217, 4
          %s226 = int_to_ptr.vmem [resolvable:$true] %s225
          %228 = dma.hbm_to_vmem [thread:$0]  %s223, 256, %s226, %s214
        $region32: #{tpu_custom_call.1} parent=27 // pred_fallthru
          _
        // Predicated region
        $region33: #{tpu_custom_call.1} parent=27 // pred_check
          %p229 = pneg %p67
        $region34: #{tpu_custom_call.1} parent=27 // pred_check_branch
          %231 = sbr.rel (%p229) target = $region36
        $region35: #{tpu_custom_call.1} parent=27 // pred_region
          %s232 = sand.u32 %s21, 1
          %s233 = scalar_lea.sflag [#allocation7], %s232
          %s234 = sand.u32 %s57, 1
          %s235 = smul.addr %s234, 16
          %s236 = scalar_lea.vmem [#allocation6], %s235
          %s238 = ssub.s32 256, 256
          %239 = vsyncadd %s233, %s238
          %s240 = smul.addr %s21, 2
          %s241 = smul.addr %s240, 128
          %s242 = scalar_lea.hbm %s1, %s241
          %s244 = sshll.u32 %s236, 4
          %s245 = int_to_ptr.vmem [resolvable:$true] %s244
          %247 = dma.hbm_to_vmem [thread:$0]  %s242, 256, %s245, %s233
        $region36: #{tpu_custom_call.1} parent=27 // pred_fallthru
          _
      $region28: #{tpu_custom_call.1} parent=5 // pred_fallthru
        _
      %p248 = scmp.le.s32.totalorder 1, %s21
      %p249 = scmp.lt.s32.totalorder %s21, 3
      %p250 = pnand %p248, %p249
      %p251 = pneg %p250
      // Predicated region
      $region37: #{tpu_custom_call.1} parent=5 // pred_check
        _
      $region38: #{tpu_custom_call.1} parent=5 // pred_check_branch
        %253 = sbr.rel (%p250) target = $region40
      $region39: #{tpu_custom_call.1} parent=5 // pred_region
        %s254 = ssub.s32 %s21, 1
        %s255 = sand.u32 %s34, 1
        %s256 = scalar_lea.sflag [#allocation4], %s255
        %s257 = sand.u32 %s34, 1
        %s258 = smul.addr %s257, 16
        %s259 = scalar_lea.vmem [#allocation3], %s258
        // Predicated region
        $region41: #{tpu_custom_call.1} parent=39 // pred_check
          %p260 = pneg %p47
        $region42: #{tpu_custom_call.1} parent=39 // pred_check_branch
          %262 = sbr.rel (%p260) target = $region44
        $region43: #{tpu_custom_call.1} parent=39 // pred_region
          %263 = dma.done %s256, 256
        $region44: #{tpu_custom_call.1} parent=39 // pred_fallthru
          _
        %s264 = sand.u32 %s26, 1
        %s265 = scalar_lea.sflag [#allocation7], %s264
        %s266 = sand.u32 %s60, 1
        %s267 = smul.addr %s266, 16
        %s268 = scalar_lea.vmem [#allocation6], %s267
        // Predicated region
        $region45: #{tpu_custom_call.1} parent=39 // pred_check
          %p269 = pneg %p73
        $region46: #{tpu_custom_call.1} parent=39 // pred_check_branch
          %271 = sbr.rel (%p269) target = $region48
        $region47: #{tpu_custom_call.1} parent=39 // pred_region
          %272 = dma.done %s265, 256
        $region48: #{tpu_custom_call.1} parent=39 // pred_fallthru
          _
        // Predicated region
        $region49: #{tpu_custom_call.1} parent=39 // pred_check
          %p273 = pneg %p94
        $region50: #{tpu_custom_call.1} parent=39 // pred_check_branch
          %275 = sbr.rel (%p273) target = $region52
        $region51: #{tpu_custom_call.1} parent=39 // pred_region
          %276 = dma.done [#allocation7], 768
        $region52: #{tpu_custom_call.1} parent=39 // pred_fallthru
          _
        // Predicated region
        $region53: #{tpu_custom_call.1} parent=39 // pred_check
          %p277 = pneg %p136
        $region54: #{tpu_custom_call.1} parent=39 // pred_check_branch
          %279 = sbr.rel (%p277) target = $region56
        $region55: #{tpu_custom_call.1} parent=39 // pred_region
          %280 = dma.done [#allocation10], 512
        $region56: #{tpu_custom_call.1} parent=39 // pred_fallthru
          _
        %s281 = sand.u32 %s34, 1
        %s282 = scalar_lea.sflag [#allocation4], %s281
        %s283 = sand.u32 %s34, 1
        %s284 = smul.addr %s283, 16
        %s285 = scalar_lea.vmem [#allocation3], %s284
        %p286 = pneg %p47
        %p287 = pneg %p44
        %s288 = sand.u32 %s26, 1
        %s289 = scalar_lea.sflag [#allocation7], %s288
        %s290 = sand.u32 %s60, 1
        %s291 = smul.addr %s290, 16
        %s292 = scalar_lea.vmem [#allocation6], %s291
        %p293 = pneg %p73
        %p294 = pneg %p70
        %p295 = pneg %p94
        %p296 = pneg %p91
        %p297 = pneg %p115
        %p298 = pneg %p112
        %p299 = pneg %p136
        %p300 = pneg %p133
        %p301 = pneg %p162
        %p302 = pneg %p159
        %s303 = sand.u32 %s149, 1
        %s304 = scalar_lea.sflag [#allocation5], %s303
        %s305 = sand.u32 %s149, 1
        %s306 = smul.addr %s305, 16
        %s307 = scalar_lea.vmem [#allocation11], %s306
        %v308 = vld [vmem:[%s259] sm:$0xff]
        %v309 = vld [vmem:[%s259 + $0x8] sm:$0xff]
        %v310 = vld [vmem:[%s268] sm:$0xff]
        %v311 = vld [vmem:[%s268 + $0x8] sm:$0xff]
        %v312 = vld [vmem:[#allocation9] ss:$8 sm:$0x3]
        %313 = vrot.lane.b32.xlu0 %v308, 17
        %v314 = vpop.permute.xlu0 %313
        %315 = vrot.lane.b32.xlu0 %v309, 17
        %v316 = vpop.permute.xlu0 %315
        %v317 = vlaneseq
        %v318 = vand.u32 %v317, 127
        %vm319 = vcmp.lt.s32.totalorder %v318, 17
        %v320 = vsel %vm319, %v314, %v316
        %v321 = vsel %vm319, %v316, %v314
        %v323 = vlaneseq
        %v324 = vshrl.u32 %v323, 7
        %v325 = vsub.s32 0, %v324
        %v326 = vrot.slane %v312, %v325
        %v327 = vlaneseq
        %v328 = vshrl.u32 %v327, 7
        %v329 = vsub.s32 1, %v328
        %v330 = vrot.slane %v312, %v329
        %v333 = vmul.f32 %v321, %v326
        %v334 = vmul.f32 %v320, %v330
        %335 = vst [vmem:[#allocation2] sm:$0xff] %v333
        %336 = vst [vmem:[#allocation2 + $0x8] sm:$0xff] %v334
        %337 = vrot.lane.b32.xlu0 %v310, 17
        %v338 = vpop.permute.xlu0 %337
        %339 = vrot.lane.b32.xlu0 %v311, 17
        %v340 = vpop.permute.xlu0 %339
        %v341 = vsel %vm319, %v338, %v340
        %v342 = vsel %vm319, %v340, %v338
        %v343 = vmul.f32 %v342, %v326
        %v344 = vmul.f32 %v341, %v330
        %345 = vst [vmem:[#allocation2 + $0x90] sm:$0xff] %v343
        %346 = vst [vmem:[#allocation2 + $0x98] sm:$0xff] %v344
        %s347 = scalar_lea.vmem [#allocation9], 1
        %v348 = vld [vmem:[%s347] ss:$8 sm:$0x3]
        %349 = vrot.lane.b32.xlu0 %v308, 16
        %v350 = vpop.permute.xlu0 %349
        %351 = vrot.lane.b32.xlu0 %v309, 16
        %v352 = vpop.permute.xlu0 %351
        %vm353 = vcmp.lt.s32.totalorder %v318, 16
        %v354 = vsel %vm353, %v350, %v352
        %v355 = vsel %vm353, %v352, %v350
        %v357 = vlaneseq
        %v358 = vshrl.u32 %v357, 7
        %v359 = vsub.s32 0, %v358
        %v360 = vrot.slane %v348, %v359
        %v361 = vlaneseq
        %v362 = vshrl.u32 %v361, 7
        %v363 = vsub.s32 1, %v362
        %v364 = vrot.slane %v348, %v363
        %v367 = vmul.f32 %v355, %v360
        %v368 = vmul.f32 %v354, %v364
        %369 = vst [vmem:[#allocation2 + $0x10] sm:$0xff] %v367
        %370 = vst [vmem:[#allocation2 + $0x18] sm:$0xff] %v368
        %371 = vrot.lane.b32.xlu0 %v310, 16
        %v372 = vpop.permute.xlu0 %371
        %373 = vrot.lane.b32.xlu0 %v311, 16
        %v374 = vpop.permute.xlu0 %373
        %v375 = vsel %vm353, %v372, %v374
        %v376 = vsel %vm353, %v374, %v372
        %v377 = vmul.f32 %v376, %v360
        %v378 = vmul.f32 %v375, %v364
        %379 = vst [vmem:[#allocation2 + $0xa0] sm:$0xff] %v377
        %380 = vst [vmem:[#allocation2 + $0xa8] sm:$0xff] %v378
        %s381 = scalar_lea.vmem [#allocation9], 2
        %v382 = vld [vmem:[%s381] ss:$8 sm:$0x3]
        %383 = vrot.lane.b32.xlu0 %v308, 15
        %v384 = vpop.permute.xlu0 %383
        %385 = vrot.lane.b32.xlu0 %v309, 15
        %v386 = vpop.permute.xlu0 %385
        %vm387 = vcmp.lt.s32.totalorder %v318, 15
        %v388 = vsel %vm387, %v384, %v386
        %v389 = vsel %vm387, %v386, %v384
        %v391 = vlaneseq
        %v392 = vshrl.u32 %v391, 7
        %v393 = vsub.s32 0, %v392
        %v394 = vrot.slane %v382, %v393
        %v395 = vlaneseq
        %v396 = vshrl.u32 %v395, 7
        %v397 = vsub.s32 1, %v396
        %v398 = vrot.slane %v382, %v397
        %v401 = vmul.f32 %v389, %v394
        %v402 = vmul.f32 %v388, %v398
        %403 = vst [vmem:[#allocation2 + $0x20] sm:$0xff] %v401
        %404 = vst [vmem:[#allocation2 + $0x28] sm:$0xff] %v402
        %405 = vrot.lane.b32.xlu0 %v310, 15
        %v406 = vpop.permute.xlu0 %405
        %407 = vrot.lane.b32.xlu0 %v311, 15
        %v408 = vpop.permute.xlu0 %407
        %v409 = vsel %vm387, %v406, %v408
        %v410 = vsel %vm387, %v408, %v406
        %v411 = vmul.f32 %v410, %v394
        %v412 = vmul.f32 %v409, %v398
        %413 = vst [vmem:[#allocation2 + $0xb0] sm:$0xff] %v411
        %414 = vst [vmem:[#allocation2 + $0xb8] sm:$0xff] %v412
        %s415 = scalar_lea.vmem [#allocation9], 3
        %v416 = vld [vmem:[%s415] ss:$8 sm:$0x3]
        %417 = vrot.lane.b32.xlu0 %v308, 1
        %v418 = vpop.permute.xlu0 %417
        %419 = vrot.lane.b32.xlu0 %v309, 1
        %v420 = vpop.permute.xlu0 %419
        %vm421 = vcmp.lt.s32.totalorder %v318, 1
        %v422 = vsel %vm421, %v418, %v420
        %v423 = vsel %vm421, %v420, %v418
        %v425 = vlaneseq
        %v426 = vshrl.u32 %v425, 7
        %v427 = vsub.s32 0, %v426
        %v428 = vrot.slane %v416, %v427
        %v429 = vlaneseq
        %v430 = vshrl.u32 %v429, 7
        %v431 = vsub.s32 1, %v430
        %v432 = vrot.slane %v416, %v431
        %v435 = vmul.f32 %v423, %v428
        %v436 = vmul.f32 %v422, %v432
        %437 = vst [vmem:[#allocation2 + $0x30] sm:$0xff] %v435
        %438 = vst [vmem:[#allocation2 + $0x38] sm:$0xff] %v436
        %439 = vrot.lane.b32.xlu0 %v310, 1
        %v440 = vpop.permute.xlu0 %439
        %441 = vrot.lane.b32.xlu0 %v311, 1
        %v442 = vpop.permute.xlu0 %441
        %v443 = vsel %vm421, %v440, %v442
        %v444 = vsel %vm421, %v442, %v440
        %v445 = vmul.f32 %v444, %v428
        %v446 = vmul.f32 %v443, %v432
        %447 = vst [vmem:[#allocation2 + $0xc0] sm:$0xff] %v445
        %448 = vst [vmem:[#allocation2 + $0xc8] sm:$0xff] %v446
        %449 = vst [vmem:[#allocation2 + $0x40] sm:$0xff] %v308
        %450 = vst [vmem:[#allocation2 + $0x48] sm:$0xff] %v309
        %451 = vst [vmem:[#allocation2 + $0xd0] sm:$0xff] %v310
        %452 = vst [vmem:[#allocation2 + $0xd8] sm:$0xff] %v311
        %s453 = scalar_lea.vmem [#allocation9], 5
        %v454 = vld [vmem:[%s453] ss:$8 sm:$0x3]
        %455 = vrot.lane.b32.xlu0 %v308, 127
        %v456 = vpop.permute.xlu0 %455
        %457 = vrot.lane.b32.xlu0 %v309, 127
        %v458 = vpop.permute.xlu0 %457
        %vm459 = vcmp.lt.s32.totalorder %v318, 127
        %v460 = vsel %vm459, %v456, %v458
        %v461 = vsel %vm459, %v458, %v456
        %v463 = vlaneseq
        %v464 = vshrl.u32 %v463, 7
        %v465 = vsub.s32 0, %v464
        %v466 = vrot.slane %v454, %v465
        %v467 = vlaneseq
        %v468 = vshrl.u32 %v467, 7
        %v469 = vsub.s32 1, %v468
        %v470 = vrot.slane %v454, %v469
        %v473 = vmul.f32 %v460, %v466
        %v474 = vmul.f32 %v461, %v470
        %475 = vst [vmem:[#allocation2 + $0x50] sm:$0xff] %v473
        %476 = vst [vmem:[#allocation2 + $0x58] sm:$0xff] %v474
        %477 = vrot.lane.b32.xlu0 %v310, 127
        %v478 = vpop.permute.xlu0 %477
        %479 = vrot.lane.b32.xlu0 %v311, 127
        %v480 = vpop.permute.xlu0 %479
        %v481 = vsel %vm459, %v478, %v480
        %v482 = vsel %vm459, %v480, %v478
        %v483 = vmul.f32 %v481, %v466
        %v484 = vmul.f32 %v482, %v470
        %485 = vst [vmem:[#allocation2 + $0xe0] sm:$0xff] %v483
        %486 = vst [vmem:[#allocation2 + $0xe8] sm:$0xff] %v484
        %s487 = scalar_lea.vmem [#allocation9], 6
        %v488 = vld [vmem:[%s487] ss:$8 sm:$0x3]
        %489 = vrot.lane.b32.xlu0 %v308, 113
        %v490 = vpop.permute.xlu0 %489
        %491 = vrot.lane.b32.xlu0 %v309, 113
        %v492 = vpop.permute.xlu0 %491
        %vm493 = vcmp.lt.s32.totalorder %v318, 113
        %v494 = vsel %vm493, %v490, %v492
        %v495 = vsel %vm493, %v492, %v490
        %v497 = vlaneseq
        %v498 = vshrl.u32 %v497, 7
        %v499 = vsub.s32 0, %v498
        %v500 = vrot.slane %v488, %v499
        %v501 = vlaneseq
        %v502 = vshrl.u32 %v501, 7
        %v503 = vsub.s32 1, %v502
        %v504 = vrot.slane %v488, %v503
        %v507 = vmul.f32 %v494, %v500
        %v508 = vmul.f32 %v495, %v504
        %509 = vst [vmem:[#allocation2 + $0x60] sm:$0xff] %v507
        %510 = vst [vmem:[#allocation2 + $0x68] sm:$0xff] %v508
        %511 = vrot.lane.b32.xlu0 %v310, 113
        %v512 = vpop.permute.xlu0 %511
        %513 = vrot.lane.b32.xlu0 %v311, 113
        %v514 = vpop.permute.xlu0 %513
        %v515 = vsel %vm493, %v512, %v514
        %v516 = vsel %vm493, %v514, %v512
        %v517 = vmul.f32 %v515, %v500
        %v518 = vmul.f32 %v516, %v504
        %519 = vst [vmem:[#allocation2 + $0xf0] sm:$0xff] %v517
        %520 = vst [vmem:[#allocation2 + $0xf8] sm:$0xff] %v518
        %s521 = scalar_lea.vmem [#allocation9], 7
        %v522 = vld [vmem:[%s521] ss:$8 sm:$0x3]
        %523 = vrot.lane.b32.xlu0 %v308, 112
        %v524 = vpop.permute.xlu0 %523
        %525 = vrot.lane.b32.xlu0 %v309, 112
        %v526 = vpop.permute.xlu0 %525
        %vm527 = vcmp.lt.s32.totalorder %v318, 112
        %v528 = vsel %vm527, %v524, %v526
        %v529 = vsel %vm527, %v526, %v524
        %v531 = vlaneseq
        %v532 = vshrl.u32 %v531, 7
        %v533 = vsub.s32 0, %v532
        %v534 = vrot.slane %v522, %v533
        %v535 = vlaneseq
        %v536 = vshrl.u32 %v535, 7
        %v537 = vsub.s32 1, %v536
        %v538 = vrot.slane %v522, %v537
        %v541 = vmul.f32 %v528, %v534
        %v542 = vmul.f32 %v529, %v538
        %543 = vst [vmem:[#allocation2 + $0x70] sm:$0xff] %v541
        %544 = vst [vmem:[#allocation2 + $0x78] sm:$0xff] %v542
        %545 = vrot.lane.b32.xlu0 %v310, 112
        %v546 = vpop.permute.xlu0 %545
        %547 = vrot.lane.b32.xlu0 %v311, 112
        %v548 = vpop.permute.xlu0 %547
        %v549 = vsel %vm527, %v546, %v548
        %v550 = vsel %vm527, %v548, %v546
        %v551 = vmul.f32 %v549, %v534
        %v552 = vmul.f32 %v550, %v538
        %553 = vst [vmem:[#allocation2 + $0x100] sm:$0xff] %v551
        %554 = vst [vmem:[#allocation2 + $0x108] sm:$0xff] %v552
        %s555 = scalar_lea.vmem [#allocation9], 16
        %v556 = vld [vmem:[%s555] ss:$8 sm:$0x3]
        %557 = vrot.lane.b32.xlu0 %v308, 111
        %v558 = vpop.permute.xlu0 %557
        %559 = vrot.lane.b32.xlu0 %v309, 111
        %v560 = vpop.permute.xlu0 %559
        %vm561 = vcmp.lt.s32.totalorder %v318, 111
        %v562 = vsel %vm561, %v558, %v560
        %v563 = vsel %vm561, %v560, %v558
        %v565 = vlaneseq
        %v566 = vshrl.u32 %v565, 7
        %v567 = vsub.s32 0, %v566
        %v568 = vrot.slane %v556, %v567
        %v569 = vlaneseq
        %v570 = vshrl.u32 %v569, 7
        %v571 = vsub.s32 1, %v570
        %v572 = vrot.slane %v556, %v571
        %v575 = vmul.f32 %v562, %v568
        %v576 = vmul.f32 %v563, %v572
        %577 = vst [vmem:[#allocation2 + $0x80] sm:$0xff] %v575
        %578 = vst [vmem:[#allocation2 + $0x88] sm:$0xff] %v576
        %579 = vrot.lane.b32.xlu0 %v310, 111
        %v580 = vpop.permute.xlu0 %579
        %581 = vrot.lane.b32.xlu0 %v311, 111
        %v582 = vpop.permute.xlu0 %581
        %v583 = vsel %vm561, %v580, %v582
        %v584 = vsel %vm561, %v582, %v580
        %v585 = vmul.f32 %v583, %v568
        %v586 = vmul.f32 %v584, %v572
        %587 = vst [vmem:[#allocation2 + $0x110] sm:$0xff] %v585
        %588 = vst [vmem:[#allocation2 + $0x118] sm:$0xff] %v586
        %v589 = vld [vmem:[#allocation8] sm:$0xff]
        %v590 = vld [vmem:[#allocation8 + $0x8] sm:$0xff]
        %v591 = vld [vmem:[#allocation8 + $0x10] sm:$0xff]
        %v592 = vld [vmem:[#allocation8 + $0x18] sm:$0xff]
        %v593 = vld [vmem:[#allocation8 + $0x20] sm:$0xff]
        %v594 = vld [vmem:[#allocation8 + $0x28] sm:$0xff]
        %v595 = vld [vmem:[#allocation2] sm:$0xff]
        %v596 = vld [vmem:[#allocation2 + $0x8] sm:$0xff]
        %v597 = vld [vmem:[#allocation2 + $0x10] sm:$0xff]
        %v598 = vld [vmem:[#allocation2 + $0x18] sm:$0xff]
        %v599 = vld [vmem:[#allocation2 + $0x20] sm:$0xff]
        %v600 = vld [vmem:[#allocation2 + $0x28] sm:$0xff]
        %v601 = vld [vmem:[#allocation2 + $0x30] sm:$0xff]
        %v602 = vld [vmem:[#allocation2 + $0x38] sm:$0xff]
        %v603 = vld [vmem:[#allocation2 + $0x40] sm:$0xff]
        %v604 = vld [vmem:[#allocation2 + $0x48] sm:$0xff]
        %v605 = vld [vmem:[#allocation2 + $0x50] sm:$0xff]
        %v606 = vld [vmem:[#allocation2 + $0x58] sm:$0xff]
        %v607 = vld [vmem:[#allocation2 + $0x60] sm:$0xff]
        %v608 = vld [vmem:[#allocation2 + $0x68] sm:$0xff]
        %v609 = vld [vmem:[#allocation2 + $0x70] sm:$0xff]
        %v610 = vld [vmem:[#allocation2 + $0x78] sm:$0xff]
        %v611 = vld [vmem:[#allocation2 + $0x80] sm:$0xff]
        %v612 = vld [vmem:[#allocation2 + $0x88] sm:$0xff]
        %v613 = vld [vmem:[#allocation2 + $0x90] sm:$0xff]
        %v614 = vld [vmem:[#allocation2 + $0x98] sm:$0xff]
        %v615 = vld [vmem:[#allocation2 + $0xa0] sm:$0xff]
        %v616 = vld [vmem:[#allocation2 + $0xa8] sm:$0xff]
        %v617 = vld [vmem:[#allocation2 + $0xb0] sm:$0xff]
        %v618 = vld [vmem:[#allocation2 + $0xb8] sm:$0xff]
        %v619 = vld [vmem:[#allocation2 + $0xc0] sm:$0xff]
        %v620 = vld [vmem:[#allocation2 + $0xc8] sm:$0xff]
        %v621 = vld [vmem:[#allocation2 + $0xd0] sm:$0xff]
        %v622 = vld [vmem:[#allocation2 + $0xd8] sm:$0xff]
        %v623 = vld [vmem:[#allocation2 + $0xe0] sm:$0xff]
        %v624 = vld [vmem:[#allocation2 + $0xe8] sm:$0xff]
        %v625 = vld [vmem:[#allocation2 + $0xf0] sm:$0xff]
        %v626 = vld [vmem:[#allocation2 + $0xf8] sm:$0xff]
        %v627 = vld [vmem:[#allocation2 + $0x100] sm:$0xff]
        %v628 = vld [vmem:[#allocation2 + $0x108] sm:$0xff]
        %v629 = vld [vmem:[#allocation2 + $0x110] sm:$0xff]
        %v630 = vld [vmem:[#allocation2 + $0x118] sm:$0xff]
        %vm631 = vcmask 130048
        %v633 = vsel %vm631, %v590, 0
        %v636 = vsel %vm631, %v592, 0
        %v639 = vsel %vm631, %v594, 0
        %641 = vmatprep.subr.mxu0 %v596
        %642 = vmatpush1.msra.mxu0 %v595
        %643 = vmatprep.subr.mxu0 %v598
        %644 = vmatpush1.msra.mxu0 %v597
        %645 = vmatprep.subr.mxu0 %v600
        %646 = vmatpush1.msra.mxu0 %v599
        %647 = vmatprep.subr.mxu0 %v602
        %648 = vmatpush1.msra.mxu0 %v601
        %649 = vmatprep.subr.mxu0 %v604
        %650 = vmatpush1.msra.mxu0 %v603
        %651 = vmatprep.subr.mxu0 %v606
        %652 = vmatpush1.msra.mxu0 %v605
        %653 = vmatprep.subr.mxu0 %v608
        %654 = vmatpush1.msra.mxu0 %v607
        %655 = vmatprep.subr.mxu0 %v610
        %656 = vmatpush1.msra.mxu0 %v609
        %657 = vmatprep.subr.mxu0 %v612
        %658 = vmatpush1.msra.mxu0 %v611
        %659 = vmatprep.subr.mxu0 %v614
        %660 = vmatpush1.msra.mxu0 %v613
        %661 = vmatprep.subr.mxu0 %v616
        %662 = vmatpush1.msra.mxu0 %v615
        %663 = vmatprep.subr.mxu0 %v618
        %664 = vmatpush1.msra.mxu0 %v617
        %665 = vmatprep.subr.mxu0 %v620
        %666 = vmatpush1.msra.mxu0 %v619
        %667 = vmatprep.subr.mxu0 %v622
        %668 = vmatpush1.msra.mxu0 %v621
        %669 = vmatprep.subr.mxu0 %v624
        %670 = vmatpush1.msra.mxu0 %v623
        %671 = vmatprep.subr.mxu0 %v626
        %672 = vmatpush1.msra.mxu0 %v625
        %673 = vmatprep.subr.mxu0 %v628
        %674 = vmatpush1.msra.mxu0 %v627
        %675 = vmatprep.subr.mxu0 %v630
        %676 = vmatpush1.msra.mxu0 %v629
        %677 = vmatprep.subr.mxu0 0.0
        %678 = vmatpush1.msra.mxu0 0.0
        %679 = vmatprep.subr.mxu0 0.0
        %680 = vmatpush1.msra.mxu0 0.0
        %681 = vmatprep.subr.mxu0 0.0
        %682 = vmatpush1.msra.mxu0 0.0
        %683 = vmatprep.subr.mxu0 0.0
        %684 = vmatpush1.msra.mxu0 0.0
        %685 = vmatprep.subr.mxu0 0.0
        %686 = vmatpush1.msra.mxu0 0.0
        %687 = vmatprep.subr.mxu0 0.0
        %688 = vmatpush1.msra.mxu0 0.0
        %689 = vmatprep.subr.mxu0 0.0
        %690 = vmatpush1.msra.mxu0 0.0
        %691 = vmatprep.subr.mxu0 0.0
        %692 = vmatpush1.msra.mxu0 0.0
        %693 = vmatprep.subr.mxu0 0.0
        %694 = vmatpush1.msra.mxu0 0.0
        %695 = vmatprep.subr.mxu0 0.0
        %696 = vmatpush1.msra.mxu0 0.0
        %697 = vmatprep.subr.mxu0 0.0
        %698 = vmatpush1.msra.mxu0 0.0
        %699 = vmatprep.subr.mxu0 0.0
        %700 = vmatpush1.msra.mxu0 0.0
        %701 = vmatprep.subr.mxu0 0.0
        %702 = vmatpush1.msra.mxu0 0.0
        %703 = vmatprep.subr.mxu0 0.0
        %704 = vmatpush1.msra.mxu0 0.0
        %705 = vmatprep.mubr.f32.mxu0 %v633
        %706 = vmatmul.mubr.f32.gmra.mrb[0].mxu0 %v589
        %v707 = vpop.f32.mrb[0].mxu0
        %v708 = vadd.f32 0.0, %v707
        %v709 = vpop.f32.mrb[0].mxu0
        %v710 = vadd.f32 0.0, %v709
        %711 = vmatprep.mubr.f32.mxu0 %v636
        %712 = vmatmul.mubr.f32.gmra.mrb[0].mxu0 %v591
        %v713 = vpop.f32.mrb[0].mxu0
        %v714 = vadd.f32 0.0, %v713
        %v715 = vpop.f32.mrb[0].mxu0
        %v716 = vadd.f32 0.0, %v715
        %717 = vmatprep.mubr.f32.mxu0 %v639
        %718 = vmatmul.mubr.f32.gmra.mrb[0].mxu0 %v593
        %v719 = vpop.f32.mrb[0].mxu0
        %v720 = vadd.f32 0.0, %v719
        %v721 = vpop.f32.mrb[0].mxu0
        %v722 = vadd.f32 0.0, %v721
        %723 = vdwg.mxu0
        %v724 = vxor.u32 %v708, 2147483648
        %v725 = vxor.u32 %v710, 2147483648
        %v726 = vmul.f32 %v724, 1.442695
        %v727 = vpow.pop %v726
        %v728 = vmul.f32 %v725, 1.442695
        %v729 = vpow.pop %v728
        %v730 = vadd.f32 %v727, 1.0
        %v731 = vadd.f32 %v729, 1.0
        %v732 = vrcp.pop %v730
        %v733 = vmul.f32 1.0, %v732
        %v734 = vrcp.pop %v731
        %v735 = vmul.f32 1.0, %v734
        %v736 = vxor.u32 %v714, 2147483648
        %v737 = vxor.u32 %v716, 2147483648
        %v738 = vmul.f32 %v736, 1.442695
        %v739 = vpow.pop %v738
        %v740 = vmul.f32 %v737, 1.442695
        %v741 = vpow.pop %v740
        %v742 = vadd.f32 %v739, 1.0
        %v743 = vadd.f32 %v741, 1.0
        %v744 = vrcp.pop %v742
        %v745 = vmul.f32 1.0, %v744
        %v746 = vrcp.pop %v743
        %v747 = vmul.f32 1.0, %v746
        %748 = vrot.lane.b32.xlu0 %v733, 17
        %v749 = vpop.permute.xlu0 %748
        %750 = vrot.lane.b32.xlu0 %v735, 17
        %v751 = vpop.permute.xlu0 %750
        %v752 = vsel %vm319, %v749, %v751
        %v753 = vsel %vm319, %v751, %v749
        %v754 = vld [vmem:[#allocation2 + $0x90] sm:$0xff]
        %v755 = vld [vmem:[#allocation2 + $0x98] sm:$0xff]
        %v756 = vmul.f32 %v754, %v753
        %v757 = vmul.f32 %v755, %v752
        %758 = vst [vmem:[#allocation2 + $0x90] sm:$0xff] %v756
        %759 = vst [vmem:[#allocation2 + $0x98] sm:$0xff] %v757
        %760 = vrot.lane.b32.xlu0 %v733, 16
        %v761 = vpop.permute.xlu0 %760
        %762 = vrot.lane.b32.xlu0 %v735, 16
        %v763 = vpop.permute.xlu0 %762
        %v764 = vsel %vm353, %v761, %v763
        %v765 = vsel %vm353, %v763, %v761
        %v766 = vld [vmem:[#allocation2 + $0xa0] sm:$0xff]
        %v767 = vld [vmem:[#allocation2 + $0xa8] sm:$0xff]
        %v768 = vmul.f32 %v766, %v765
        %v769 = vmul.f32 %v767, %v764
        %770 = vst [vmem:[#allocation2 + $0xa0] sm:$0xff] %v768
        %771 = vst [vmem:[#allocation2 + $0xa8] sm:$0xff] %v769
        %772 = vrot.lane.b32.xlu0 %v733, 15
        %v773 = vpop.permute.xlu0 %772
        %774 = vrot.lane.b32.xlu0 %v735, 15
        %v775 = vpop.permute.xlu0 %774
        %v776 = vsel %vm387, %v773, %v775
        %v777 = vsel %vm387, %v775, %v773
        %v778 = vld [vmem:[#allocation2 + $0xb0] sm:$0xff]
        %v779 = vld [vmem:[#allocation2 + $0xb8] sm:$0xff]
        %v780 = vmul.f32 %v778, %v777
        %v781 = vmul.f32 %v779, %v776
        %782 = vst [vmem:[#allocation2 + $0xb0] sm:$0xff] %v780
        %783 = vst [vmem:[#allocation2 + $0xb8] sm:$0xff] %v781
        %784 = vrot.lane.b32.xlu0 %v733, 1
        %v785 = vpop.permute.xlu0 %784
        %786 = vrot.lane.b32.xlu0 %v735, 1
        %v787 = vpop.permute.xlu0 %786
        %v788 = vsel %vm421, %v785, %v787
        %v789 = vsel %vm421, %v787, %v785
        %v790 = vld [vmem:[#allocation2 + $0xc0] sm:$0xff]
        %v791 = vld [vmem:[#allocation2 + $0xc8] sm:$0xff]
        %v792 = vmul.f32 %v790, %v789
        %v793 = vmul.f32 %v791, %v788
        %794 = vst [vmem:[#allocation2 + $0xc0] sm:$0xff] %v792
        %795 = vst [vmem:[#allocation2 + $0xc8] sm:$0xff] %v793
        %v796 = vld [vmem:[#allocation2 + $0xd0] sm:$0xff]
        %v797 = vld [vmem:[#allocation2 + $0xd8] sm:$0xff]
        %v798 = vmul.f32 %v796, %v733
        %v799 = vmul.f32 %v797, %v735
        %800 = vst [vmem:[#allocation2 + $0xd0] sm:$0xff] %v798
        %801 = vst [vmem:[#allocation2 + $0xd8] sm:$0xff] %v799
        %802 = vrot.lane.b32.xlu0 %v733, 127
        %v803 = vpop.permute.xlu0 %802
        %804 = vrot.lane.b32.xlu0 %v735, 127
        %v805 = vpop.permute.xlu0 %804
        %v806 = vsel %vm459, %v803, %v805
        %v807 = vsel %vm459, %v805, %v803
        %v808 = vld [vmem:[#allocation2 + $0xe0] sm:$0xff]
        %v809 = vld [vmem:[#allocation2 + $0xe8] sm:$0xff]
        %v810 = vmul.f32 %v808, %v806
        %v811 = vmul.f32 %v809, %v807
        %812 = vst [vmem:[#allocation2 + $0xe0] sm:$0xff] %v810
        %813 = vst [vmem:[#allocation2 + $0xe8] sm:$0xff] %v811
        %814 = vrot.lane.b32.xlu0 %v733, 113
        %v815 = vpop.permute.xlu0 %814
        %816 = vrot.lane.b32.xlu0 %v735, 113
        %v817 = vpop.permute.xlu0 %816
        %v818 = vsel %vm493, %v815, %v817
        %v819 = vsel %vm493, %v817, %v815
        %v820 = vld [vmem:[#allocation2 + $0xf0] sm:$0xff]
        %v821 = vld [vmem:[#allocation2 + $0xf8] sm:$0xff]
        %v822 = vmul.f32 %v820, %v818
        %v823 = vmul.f32 %v821, %v819
        %824 = vst [vmem:[#allocation2 + $0xf0] sm:$0xff] %v822
        %825 = vst [vmem:[#allocation2 + $0xf8] sm:$0xff] %v823
        %826 = vrot.lane.b32.xlu0 %v733, 112
        %v827 = vpop.permute.xlu0 %826
        %828 = vrot.lane.b32.xlu0 %v735, 112
        %v829 = vpop.permute.xlu0 %828
        %v830 = vsel %vm527, %v827, %v829
        %v831 = vsel %vm527, %v829, %v827
        %v832 = vld [vmem:[#allocation2 + $0x100] sm:$0xff]
        %v833 = vld [vmem:[#allocation2 + $0x108] sm:$0xff]
        %v834 = vmul.f32 %v832, %v830
        %v835 = vmul.f32 %v833, %v831
        %836 = vst [vmem:[#allocation2 + $0x100] sm:$0xff] %v834
        %837 = vst [vmem:[#allocation2 + $0x108] sm:$0xff] %v835
        %838 = vrot.lane.b32.xlu0 %v733, 111
        %v839 = vpop.permute.xlu0 %838
        %840 = vrot.lane.b32.xlu0 %v735, 111
        %v841 = vpop.permute.xlu0 %840
        %v842 = vsel %vm561, %v839, %v841
        %v843 = vsel %vm561, %v841, %v839
        %v844 = vld [vmem:[#allocation2 + $0x110] sm:$0xff]
        %v845 = vld [vmem:[#allocation2 + $0x118] sm:$0xff]
        %v846 = vmul.f32 %v844, %v842
        %v847 = vmul.f32 %v845, %v843
        %848 = vst [vmem:[#allocation2 + $0x110] sm:$0xff] %v846
        %849 = vst [vmem:[#allocation2 + $0x118] sm:$0xff] %v847
        %v850 = vld [vmem:[%s3] sm:$0xff]
        %v851 = vld [vmem:[#allocation2 + $0x90] sm:$0xff]
        %v852 = vld [vmem:[#allocation2 + $0x98] sm:$0xff]
        %v853 = vld [vmem:[#allocation2 + $0xa0] sm:$0xff]
        %v854 = vld [vmem:[#allocation2 + $0xa8] sm:$0xff]
        %v855 = vld [vmem:[#allocation2 + $0xb0] sm:$0xff]
        %v856 = vld [vmem:[#allocation2 + $0xb8] sm:$0xff]
        %v857 = vld [vmem:[#allocation2 + $0xc0] sm:$0xff]
        %v858 = vld [vmem:[#allocation2 + $0xc8] sm:$0xff]
        %v859 = vld [vmem:[#allocation2 + $0xd0] sm:$0xff]
        %v860 = vld [vmem:[#allocation2 + $0xd8] sm:$0xff]
        %v861 = vld [vmem:[#allocation2 + $0xe0] sm:$0xff]
        %v862 = vld [vmem:[#allocation2 + $0xe8] sm:$0xff]
        %v863 = vld [vmem:[#allocation2 + $0xf0] sm:$0xff]
        %v864 = vld [vmem:[#allocation2 + $0xf8] sm:$0xff]
        %v865 = vld [vmem:[#allocation2 + $0x100] sm:$0xff]
        %v866 = vld [vmem:[#allocation2 + $0x108] sm:$0xff]
        %v867 = vld [vmem:[#allocation2 + $0x110] sm:$0xff]
        %v868 = vld [vmem:[#allocation2 + $0x118] sm:$0xff]
        %vm869 = vcmask 588800
        %v871 = vsel %vm869, %v850, 0
        %873 = vmatprep.subr.mxu0 %v852
        %874 = vmatpush1.msra.mxu0 %v851
        %875 = vmatprep.subr.mxu0 %v854
        %876 = vmatpush1.msra.mxu0 %v853
        %877 = vmatprep.subr.mxu0 %v856
        %878 = vmatpush1.msra.mxu0 %v855
        %879 = vmatprep.subr.mxu0 %v858
        %880 = vmatpush1.msra.mxu0 %v857
        %881 = vmatprep.subr.mxu0 %v860
        %882 = vmatpush1.msra.mxu0 %v859
        %883 = vmatprep.subr.mxu0 %v862
        %884 = vmatpush1.msra.mxu0 %v861
        %885 = vmatprep.subr.mxu0 %v864
        %886 = vmatpush1.msra.mxu0 %v863
        %887 = vmatprep.subr.mxu0 %v866
        %888 = vmatpush1.msra.mxu0 %v865
        %889 = vmatprep.subr.mxu0 %v868
        %890 = vmatpush1.msra.mxu0 %v867
        %891 = vmatprep.subr.mxu0 0.0
        %892 = vmatpush1.msra.mxu0 0.0
        %893 = vmatprep.subr.mxu0 0.0
        %894 = vmatpush1.msra.mxu0 0.0
        %895 = vmatprep.subr.mxu0 0.0
        %896 = vmatpush1.msra.mxu0 0.0
        %897 = vmatprep.subr.mxu0 0.0
        %898 = vmatpush1.msra.mxu0 0.0
        %899 = vmatprep.subr.mxu0 0.0
        %900 = vmatpush1.msra.mxu0 0.0
        %901 = vmatprep.subr.mxu0 0.0
        %902 = vmatpush1.msra.mxu0 0.0
        %903 = vmatprep.subr.mxu0 0.0
        %904 = vmatpush1.msra.mxu0 0.0
        %905 = vmatprep.subr.mxu0 0.0
        %906 = vmatpush1.msra.mxu0 0.0
        %907 = vmatprep.subr.mxu0 0.0
        %908 = vmatpush1.msra.mxu0 0.0
        %909 = vmatprep.subr.mxu0 0.0
        %910 = vmatpush1.msra.mxu0 0.0
        %911 = vmatprep.subr.mxu0 0.0
        %912 = vmatpush1.msra.mxu0 0.0
        %913 = vmatprep.subr.mxu0 0.0
        %914 = vmatpush1.msra.mxu0 0.0
        %915 = vmatprep.subr.mxu0 0.0
        %916 = vmatpush1.msra.mxu0 0.0
        %917 = vmatprep.subr.mxu0 0.0
        %918 = vmatpush1.msra.mxu0 0.0
        %919 = vmatprep.subr.mxu0 0.0
        %920 = vmatpush1.msra.mxu0 0.0
        %921 = vmatprep.subr.mxu0 0.0
        %922 = vmatpush1.msra.mxu0 0.0
        %923 = vmatprep.subr.mxu0 0.0
        %924 = vmatpush1.msra.mxu0 0.0
        %925 = vmatprep.subr.mxu0 0.0
        %926 = vmatpush1.msra.mxu0 0.0
        %927 = vmatprep.subr.mxu0 0.0
        %928 = vmatpush1.msra.mxu0 0.0
        %929 = vmatprep.subr.mxu0 0.0
        %930 = vmatpush1.msra.mxu0 0.0
        %931 = vmatprep.subr.mxu0 0.0
        %932 = vmatpush1.msra.mxu0 0.0
        %933 = vmatprep.subr.mxu0 0.0
        %934 = vmatpush1.msra.mxu0 0.0
        %935 = vmatprep.subr.mxu0 0.0
        %936 = vmatpush1.msra.mxu0 0.0
        %937 = vmatprep.mubr.f32.mxu0 0.0
        %938 = vmatmul.mubr.f32.gmra.mrb[0].mxu0 %v871
        %v939 = vpop.f32.mrb[0].mxu0
        %v940 = vadd.f32 0.0, %v939
        %v941 = vpop.f32.mrb[0].mxu0
        %v942 = vadd.f32 0.0, %v941
        %943 = vdwg.mxu0
        %v944 = vadd.f32 %v720, %v940
        %v945 = vadd.f32 %v722, %v942
        %v946 = vtanh.pop %v944
        %v947 = vtanh.pop %v945
        %v948 = vmul.f32 %v745, %v310
        %v949 = vmul.f32 %v747, %v311
        %v950 = vsub.f32 1.0, %v745
        %v951 = vsub.f32 1.0, %v747
        %v952 = vmul.f32 %v950, %v946
        %v953 = vmul.f32 %v951, %v947
        %v954 = vadd.f32 %v948, %v952
        %v955 = vadd.f32 %v949, %v953
        %956 = vst [vmem:[%s307] sm:$0xff] %v954
        %957 = vst [vmem:[%s307 + $0x8] sm:$0xff] %v955
        %s958 = sand.u32 %s149, 1
        %s959 = scalar_lea.sflag [#allocation5], %s958
        %s960 = sand.u32 %s149, 1
        %s961 = smul.addr %s960, 16
        %s962 = scalar_lea.vmem [#allocation11], %s961
        // Predicated region
        $region57: #{tpu_custom_call.1} parent=39 // pred_check
          %p963 = pneg %p159
        $region58: #{tpu_custom_call.1} parent=39 // pred_check_branch
          %965 = sbr.rel (%p963) target = $region60
        $region59: #{tpu_custom_call.1} parent=39 // pred_region
          %s967 = ssub.s32 256, 256
          %968 = vsyncadd %s959, %s967
          %s969 = smul.addr %s26, 2
          %s970 = smul.addr %s969, 128
          %s971 = scalar_lea.hbm %s5, %s970
          %s973 = sshll.u32 %s962, 4
          %s974 = int_to_ptr.vmem [resolvable:$true] %s973
          %976 = dma.vmem_to_hbm [thread:$0]  %s974, 256, %s971, %s959
        $region60: #{tpu_custom_call.1} parent=39 // pred_fallthru
          _
      $region40: #{tpu_custom_call.1} parent=5 // pred_fallthru
        _
      %p977 = scmp.le.s32.totalorder 2, %s21
      // Predicated region
      $region61: #{tpu_custom_call.1} parent=5 // pred_check
        %p978 = pneg %p977
      $region62: #{tpu_custom_call.1} parent=5 // pred_check_branch
        %980 = sbr.rel (%p978) target = $region64
      $region63: #{tpu_custom_call.1} parent=5 // pred_region
        %s981 = ssub.s32 %s21, 2
        // Predicated region
        $region65: #{tpu_custom_call.1} parent=63 // pred_check
          %p982 = pneg %p165
        $region66: #{tpu_custom_call.1} parent=63 // pred_check_branch
          %984 = sbr.rel (%p982) target = $region68
        $region67: #{tpu_custom_call.1} parent=63 // pred_region
          %s985 = sand.u32 %s150, 1
          %s986 = scalar_lea.sflag [#allocation5], %s985
          %s987 = sand.u32 %s150, 1
          %s988 = smul.addr %s987, 16
          %s989 = scalar_lea.vmem [#allocation11], %s988
          %990 = dma.done %s986, 256
        $region68: #{tpu_custom_call.1} parent=63 // pred_fallthru
          _
      $region64: #{tpu_custom_call.1} parent=5 // pred_fallthru
        _
    $region6: #{tpu_custom_call.1} parent=1 // loop_footer
      %s25 = sadd.s32 1, %s21
    $region7: #{tpu_custom_call.1} parent=1 // loop_footer_branch
      %20 = sbr.rel target = $region3
    $region8: #{tpu_custom_call.1} parent=1 // loop_exit
      _
    %991 = vsyncpa [#allocation4], 1
    %s992 = scalar_lea.sflag [#allocation4], 1
    %993 = vsyncpa %s992, 1
    %994 = vsyncpa [#allocation7], 1
    %s995 = scalar_lea.sflag [#allocation7], 1
    %996 = vsyncpa %s995, 1
    %997 = vsyncpa [#allocation10], 1
    %998 = vsyncpa [#allocation5], 1
    %s999 = scalar_lea.sflag [#allocation5], 1
    %1000 = vsyncpa %s999, 1

</llo_original>
